<compile_context>
chip_gen: v5e
topology: v5e:2x2
jax: 0.10.0
libtpu: 0.0.40
codegen_flags: <defaults>
</compile_context>

<pallas_src>
import jax
import jax.numpy as jnp
from jax.experimental import pallas as pl
from jax.experimental.pallas import tpu as pltpu

_MIB = 1024 * 1024


def _ebm_forward_kernel(x_ref, z_ref, w_ref, b_ref, c_ref, o_ref):
    x = x_ref[...]                         # [TB, DX], native dtype (f32 or bf16)
    z = z_ref[...]                         # [TB, DZ]
    w = w_ref[...]                         # [DX, DZ]
    b = b_ref[...].astype(jnp.float32)     # [1, DX]
    c = c_ref[...].astype(jnp.float32)     # [1, DZ]

    # MXU: xw[n, j] = sum_i x[n, i] w[i, j], accumulated in f32.
    xw = jnp.dot(x, w, preferred_element_type=jnp.float32)        # [TB, DZ] f32

    x_f = x.astype(jnp.float32)
    z_f = z.astype(jnp.float32)

    # Fused per-row contribution matrices (2 reductions instead of 4):
    mz = z_f * (xw + c)                    # bilinear + Z @ c         [TB, DZ]
    mx = x_f * (b - 0.5 * x_f)             # X @ b - 0.5 ||X||^2      [TB, DX]

    # Lane-dense row-sums: ones(1, D) contracted against M's feature axis gives
    # a [1, TB] row directly (q @ k.T-style dot_general), so the store is a full
    # lane-dense vst instead of a masked (TB, 1) store.
    dn = (((1,), (1,)), ((), ()))          # contract lhs dim 1 with rhs dim 1
    ones_z = jnp.ones((1, mz.shape[-1]), jnp.float32)
    ones_x = jnp.ones((1, mx.shape[-1]), jnp.float32)
    e = (jax.lax.dot_general(ones_z, mz, dn, preferred_element_type=jnp.float32)
         + jax.lax.dot_general(ones_x, mx, dn, preferred_element_type=jnp.float32))

    o_ref[...] = e.astype(o_ref.dtype)     # [1, TB]


def _vmem_budgets():
    """Generation-aware (tile_budget_bytes, vmem_limit_bytes)."""
    cap = None
    try:
        cap = getattr(pltpu.get_tpu_info(), "vmem_capacity_bytes", None)
    except Exception:
        cap = None
    if cap is None:
        cap = 64 * _MIB                    # conservative: assume v7x per-TC VMEM
    if cap <= 64 * _MIB:                   # v7x: 64 MiB physical per TensorCore
        return 24 * _MIB, 48 * _MIB
    return 72 * _MIB, 100 * _MIB           # v5e / v6e: 128 MiB physical


def _pick_batch_tile(n_pad128, DX, DZ, in_itemsize, budget_bytes):
    """Largest 128-multiple batch tile whose full VMEM footprint (DMA tiles +
    f32 body intermediates + single-buffered W/b/c) fits budget_bytes, capped
    so the grid has >= 2 steps when the batch allows (keeps both v7x TCs busy)."""
    # Constant operands W, b, c: single-buffered (pipeline_mode=Buffered(1)).
    fixed = (DX * DZ + DX + DZ) * in_itemsize
    # Per batch row: double-buffered X/Z DMA tiles, double-buffered f32 output
    # row, plus f32 body intermediates (xw, x_f, z_f, mz, mx).
    per_row = (2 * (DX + DZ) * in_itemsize
               + 2 * 4
               + (2 * DX + 3 * DZ) * 4)
    avail = budget_bytes - fixed
    if avail < per_row * 128:
        # W alone nearly fills the budget.
        # TODO(synk): DX (K) tiling grid axis + accumulator needed at this point.
        return 128
    tb_cap = (avail // per_row) // 128 * 128
    tb_cap = min(tb_cap, n_pad128)
    if n_pad128 >= 256:
        # Guarantee >= 2 grid steps (v7x megacore sharding over the batch axis).
        tb_cap = min(tb_cap, (n_pad128 // 2) // 128 * 128)
    tb_cap = max(tb_cap, 128)
    # Prefer a tile that divides the padded batch exactly (zero batch padding),
    # as long as it stays within 2x of the cap; otherwise pad up to grid*TB.
    tb = tb_cap
    while tb >= max(128, tb_cap // 2):
        if n_pad128 % tb == 0:
            return tb
        tb -= 128
    return tb_cap


def ebm_forward(X, Z, W, b, c, *, batch_tile=None, ingest_dtype=None,
                vmem_limit_bytes=None):
    """Pallas forward: returns the log unnormalised density, shape [N]."""
    N, DX = X.shape
    N2, DZ = Z.shape
    assert N == N2 and W.shape == (DX, DZ)

    if ingest_dtype is not None:
        # bf16 ingest: halves the HBM->VMEM stream; f32 accumulation in-kernel.
        X = X.astype(ingest_dtype)
        Z = Z.astype(ingest_dtype)
        W = W.astype(ingest_dtype)

    b2 = b.reshape(1, DX)
    c2 = c.reshape(1, DZ)

    tile_budget, auto_limit = _vmem_budgets()
    if vmem_limit_bytes is None:
        vmem_limit_bytes = auto_limit

    in_itemsize = max(X.dtype.itemsize, Z.dtype.itemsize)
    n_pad128 = ((N + 127) // 128) * 128

    if batch_tile is not None:
        TB = batch_tile
        assert TB % 128 == 0, "batch_tile must be a multiple of 128"
    else:
        TB = _pick_batch_tile(n_pad128, DX, DZ, in_itemsize, tile_budget)

    n_steps = pl.cdiv(N, TB)
    N_pad = n_steps * TB
    if N_pad != N:
        # Zero-pad ragged batches: keeps the pipelined, lane-dense fast path;
        # padded rows contribute energy 0 and are sliced off below.
        X = jnp.pad(X, ((0, N_pad - N), (0, 0)))
        Z = jnp.pad(Z, ((0, N_pad - N), (0, 0)))

    def _call(single_buffer_consts):
        const_kw = ({"pipeline_mode": pl.Buffered(1)}
                    if single_buffer_consts else {})
        in_specs = [
            pl.BlockSpec((TB, DX), lambda i: (i, 0)),              # X (pipelined)
            pl.BlockSpec((TB, DZ), lambda i: (i, 0)),              # Z (pipelined)
            pl.BlockSpec((DX, DZ), lambda i: (0, 0), **const_kw),  # W (constant)
            pl.BlockSpec((1, DX), lambda i: (0, 0), **const_kw),   # b (constant)
            pl.BlockSpec((1, DZ), lambda i: (0, 0), **const_kw),   # c (constant)
        ]
        return pl.pallas_call(
            _ebm_forward_kernel,
            out_shape=jax.ShapeDtypeStruct((1, N_pad), jnp.float32),  # lane-dense
            grid_spec=pltpu.PrefetchScalarGridSpec(
                num_scalar_prefetch=0,
                grid=(n_steps,),
                in_specs=in_specs,
                out_specs=pl.BlockSpec((1, TB), lambda i: (0, i)),
            ),
            compiler_params=pltpu.CompilerParams(
                dimension_semantics=("parallel",),
                vmem_limit_bytes=vmem_limit_bytes,
            ),
        )(X, Z, W, b2, c2)

    try:
        out = _call(True)            # single-buffered constant operands
    except Exception:
        out = _call(False)           # fallback if Buffered(1) is rejected

    return out.reshape(N_pad)[:N]


class LatentEBMAdapterJAX:
    """JAX/Pallas analogue of LatentEBMAdapter: forward delegates to the
    wrapped module's forward (here the Pallas-kernel-backed energy)."""

    def __init__(self, forward_fn, var_type_obs, var_type_latent):
        self._forward_fn = forward_fn
        self._var_type_obs = var_type_obs
        self._var_type_latent = var_type_latent

    def forward(self, X, Z):
        return self._forward_fn(X, Z)

    @property
    def var_type_obs(self):
        return self._var_type_obs

    @property
    def var_type_latent(self):
        return self._var_type_latent

    # score_joint_* for 'continuous' var types = grad of forward wrt X / Z.
    # jax.grad through the Pallas forward needs a custom_vjp; closed-form
    # gradients of this energy are provided in plain JAX instead.
    # TODO(synk): lattice / lattice_onehot score variants (forward_diff) not ported.
    def score_joint_latent(self, X, Z, W, c):
        assert self._var_type_latent == 'continuous'
        return X @ W + c[None, :]          # d f / d Z : [N, DZ]

    def score_joint_obs(self, X, Z, W, b):
        assert self._var_type_obs == 'continuous'
        return Z @ W.T + b[None, :] - X    # d f / d X : [N, DX]


def _ref_energy(X, Z, W, b, c):
    hi = jax.lax.Precision.HIGHEST
    return (jnp.sum(jnp.dot(X, W, precision=hi) * Z, axis=-1)
            + jnp.dot(X, b, precision=hi)
            + jnp.dot(Z, c, precision=hi)
            - 0.5 * jnp.sum(X * X, axis=-1))


if __name__ == "__main__":
    key = jax.random.PRNGKey(0)
    kx, kz, kw, kb, kc = jax.random.split(key, 5)

    N, DX, DZ = 512, 256, 128
    X = jax.random.normal(kx, (N, DX), dtype=jnp.float32)
    Z = jax.random.normal(kz, (N, DZ), dtype=jnp.float32)

    # Deterministic parameter init (synthetic, not a checkpoint load).
    W = 0.1 * jax.random.normal(kw, (DX, DZ), dtype=jnp.float32)
    b = 0.1 * jax.random.normal(kb, (DX,), dtype=jnp.float32)
    c = 0.1 * jax.random.normal(kc, (DZ,), dtype=jnp.float32)

    ebm = LatentEBMAdapterJAX(
        forward_fn=lambda x, z: ebm_forward(x, z, W, b, c, batch_tile=128),
        var_type_obs='continuous',
        var_type_latent='continuous',
    )

    ref = _ref_energy(X, Z, W, b, c)

    # 1) Forced small tile (4 pipelined grid steps).
    out = jax.block_until_ready(ebm.forward(X, Z))
    assert out.shape == (N,)
    assert jnp.allclose(out, ref, atol=1e-2, rtol=1e-3)

    # 2) Default generation-aware tile picker (>= 2 grid steps).
    out_default = jax.block_until_ready(ebm_forward(X, Z, W, b, c))
    assert jnp.allclose(out_default, ref, atol=1e-2, rtol=1e-3)

    # 3) Ragged batch (N not divisible by 128) -> padded, pipelined path.
    Nr = 200
    Xr, Zr = X[:Nr], Z[:Nr]
    out_ragged = jax.block_until_ready(ebm_forward(Xr, Zr, W, b, c))
    assert out_ragged.shape == (Nr,)
    assert jnp.allclose(out_ragged, ref[:Nr], atol=1e-2, rtol=1e-3)

    # 4) bf16 ingest path (halved HBM stream, f32 accumulation), loose tolerance.
    out_bf16 = jax.block_until_ready(
        ebm_forward(X, Z, W, b, c, ingest_dtype=jnp.bfloat16))
    assert jnp.allclose(out_bf16, ref, atol=2.0, rtol=5e-2)

    print("KERNEL_OK")
</pallas_src>

<mosaic_0001>
module attributes {stable_mosaic.version = 11 : i64} {
  func.func @_ebm_forward_kernel(%arg0: i32, %arg1: memref<128x256xf32, #tpu.memory_space<vmem>>, %arg2: memref<128x128xf32, #tpu.memory_space<vmem>>, %arg3: memref<256x128xf32, #tpu.memory_space<vmem>>, %arg4: memref<1x256xf32, #tpu.memory_space<vmem>>, %arg5: memref<1x128xf32, #tpu.memory_space<vmem>>, %arg6: memref<1x128xf32, #tpu.memory_space<vmem>>) attributes {dimension_semantics = [#tpu.dimension_semantics<parallel>], iteration_bounds = array<i64: 4>, scalar_prefetch = 0 : i64, scratch_operands = 0 : i64, tpu.core_type = #tpu.core_type<tc>, window_params = [{transform_indices = @transform_0, window_bounds = array<i64: 128, 256>}, {transform_indices = @transform_1, window_bounds = array<i64: 128, 128>}, {pipeline_mode = #tpu.pipeline_mode<synchronous>, transform_indices = @transform_2, window_bounds = array<i64: 256, 128>}, {pipeline_mode = #tpu.pipeline_mode<synchronous>, transform_indices = @transform_3, window_bounds = array<i64: 1, 256>}, {pipeline_mode = #tpu.pipeline_mode<synchronous>, transform_indices = @transform_4, window_bounds = array<i64: 1, 128>}, {transform_indices = @transform_5, window_bounds = array<i64: 1, 128>}]} {
    %c0 = arith.constant 0 : index
    %c0_0 = arith.constant 0 : index
    %0 = vector.load %arg1[%c0, %c0_0] : memref<128x256xf32, #tpu.memory_space<vmem>>, vector<128x256xf32>
    %c0_1 = arith.constant 0 : index
    %c0_2 = arith.constant 0 : index
    %1 = vector.load %arg2[%c0_1, %c0_2] : memref<128x128xf32, #tpu.memory_space<vmem>>, vector<128x128xf32>
    %c0_3 = arith.constant 0 : index
    %c0_4 = arith.constant 0 : index
    %2 = vector.load %arg3[%c0_3, %c0_4] : memref<256x128xf32, #tpu.memory_space<vmem>>, vector<256x128xf32>
    %c0_5 = arith.constant 0 : index
    %c0_6 = arith.constant 0 : index
    %3 = vector.load %arg4[%c0_5, %c0_6] : memref<1x256xf32, #tpu.memory_space<vmem>>, vector<1x256xf32>
    %c0_7 = arith.constant 0 : index
    %c0_8 = arith.constant 0 : index
    %4 = vector.load %arg5[%c0_7, %c0_8] : memref<1x128xf32, #tpu.memory_space<vmem>>, vector<1x128xf32>
    %cst = arith.constant dense<0.000000e+00> : vector<128x128xf32>
    %5 = tpu.matmul %0, %2, %cst {dimension_numbers = #tpu.dot_dimension_numbers<[1], [0], [0], [1], [0, 0, 1, 1], [], []>} : vector<128x256xf32>, vector<256x128xf32>, vector<128x128xf32> -> vector<128x128xf32>
    %6 = vector.broadcast %4 : vector<1x128xf32> to vector<128x128xf32>
    %7 = arith.addf %5, %6 : vector<128x128xf32>
    %8 = arith.mulf %1, %7 : vector<128x128xf32>
    %cst_9 = arith.constant 5.000000e-01 : f32
    %9 = vector.broadcast %cst_9 : f32 to vector<128x256xf32>
    %10 = arith.mulf %9, %0 : vector<128x256xf32>
    %11 = vector.broadcast %3 : vector<1x256xf32> to vector<128x256xf32>
    %12 = arith.subf %11, %10 : vector<128x256xf32>
    %13 = arith.mulf %0, %12 : vector<128x256xf32>
    %cst_10 = arith.constant 1.000000e+00 : f32
    %14 = vector.broadcast %cst_10 : f32 to vector<1x128xf32>
    %cst_11 = arith.constant 1.000000e+00 : f32
    %15 = vector.broadcast %cst_11 : f32 to vector<1x256xf32>
    %cst_12 = arith.constant dense<0.000000e+00> : vector<1x128xf32>
    %16 = tpu.matmul %14, %8, %cst_12 {dimension_numbers = #tpu.dot_dimension_numbers<[1], [1], [0], [0], [0, 0, 1, 0], [], []>} : vector<1x128xf32>, vector<128x128xf32>, vector<1x128xf32> -> vector<1x128xf32>
    %cst_13 = arith.constant dense<0.000000e+00> : vector<1x128xf32>
    %17 = tpu.matmul %15, %13, %cst_13 {dimension_numbers = #tpu.dot_dimension_numbers<[1], [1], [0], [0], [0, 0, 1, 0], [], []>} : vector<1x256xf32>, vector<128x256xf32>, vector<1x128xf32> -> vector<1x128xf32>
    %18 = arith.addf %16, %17 : vector<1x128xf32>
    %c0_14 = arith.constant 0 : index
    %c0_15 = arith.constant 0 : index
    %19 = vector.load %arg6[%c0_14, %c0_15] : memref<1x128xf32, #tpu.memory_space<vmem>>, vector<1x128xf32>
    tpu.vector_store %arg6[%c0_14, %c0_15], %18 {strides = array<i32>} : memref<1x128xf32, #tpu.memory_space<vmem>>, vector<1x128xf32>,
    return
  }
  func.func @transform_0(%arg0: i32) -> (i32, i32) {
    %c0_i32 = arith.constant 0 : i32
    %c0_i32_0 = arith.constant 0 : i32
    return %arg0, %c0_i32 : i32, i32
  }
  func.func @transform_1(%arg0: i32) -> (i32, i32) {
    %c0_i32 = arith.constant 0 : i32
    %c0_i32_0 = arith.constant 0 : i32
    return %arg0, %c0_i32 : i32, i32
  }
  func.func @transform_2(%arg0: i32) -> (i32, i32) {
    %c0_i32 = arith.constant 0 : i32
    %c0_i32_0 = arith.constant 0 : i32
    %c0_i32_1 = arith.constant 0 : i32
    return %c0_i32, %c0_i32_0 : i32, i32
  }
  func.func @transform_3(%arg0: i32) -> (i32, i32) {
    %c0_i32 = arith.constant 0 : i32
    %c0_i32_0 = arith.constant 0 : i32
    %c0_i32_1 = arith.constant 0 : i32
    return %c0_i32, %c0_i32_0 : i32, i32
  }
  func.func @transform_4(%arg0: i32) -> (i32, i32) {
    %c0_i32 = arith.constant 0 : i32
    %c0_i32_0 = arith.constant 0 : i32
    %c0_i32_1 = arith.constant 0 : i32
    return %c0_i32, %c0_i32_0 : i32, i32
  }
  func.func @transform_5(%arg0: i32) -> (i32, i32) {
    %c0_i32 = arith.constant 0 : i32
    %c0_i32_0 = arith.constant 0 : i32
    return %c0_i32, %arg0 : i32, i32
  }
}

module attributes {stable_mosaic.version = 11 : i64} {
  func.func @_ebm_forward_kernel(%arg0: i32, %arg1: memref<128x256xf32, #tpu.memory_space<vmem>>, %arg2: memref<128x128xf32, #tpu.memory_space<vmem>>, %arg3: memref<256x128xf32, #tpu.memory_space<vmem>>, %arg4: memref<1x256xf32, #tpu.memory_space<vmem>>, %arg5: memref<1x128xf32, #tpu.memory_space<vmem>>, %arg6: memref<1x128xf32, #tpu.memory_space<vmem>>) attributes {dimension_semantics = [#tpu.dimension_semantics<parallel>], iteration_bounds = array<i64: 4>, scalar_prefetch = 0 : i64, scratch_operands = 0 : i64, tpu.core_type = #tpu.core_type<tc>, window_params = [{transform_indices = @transform_0, window_bounds = array<i64: 128, 256>}, {transform_indices = @transform_1, window_bounds = array<i64: 128, 128>}, {pipeline_mode = #tpu.pipeline_mode<synchronous>, transform_indices = @transform_2, window_bounds = array<i64: 256, 128>}, {pipeline_mode = #tpu.pipeline_mode<synchronous>, transform_indices = @transform_3, window_bounds = array<i64: 1, 256>}, {pipeline_mode = #tpu.pipeline_mode<synchronous>, transform_indices = @transform_4, window_bounds = array<i64: 1, 128>}, {transform_indices = @transform_5, window_bounds = array<i64: 1, 128>}]} {
    %c0 = arith.constant 0 : index
    %c0_0 = arith.constant 0 : index
    %0 = vector.load %arg1[%c0, %c0_0] : memref<128x256xf32, #tpu.memory_space<vmem>>, vector<128x256xf32>
    %c0_1 = arith.constant 0 : index
    %c0_2 = arith.constant 0 : index
    %1 = vector.load %arg2[%c0_1, %c0_2] : memref<128x128xf32, #tpu.memory_space<vmem>>, vector<128x128xf32>
    %c0_3 = arith.constant 0 : index
    %c0_4 = arith.constant 0 : index
    %2 = vector.load %arg3[%c0_3, %c0_4] : memref<256x128xf32, #tpu.memory_space<vmem>>, vector<256x128xf32>
    %c0_5 = arith.constant 0 : index
    %c0_6 = arith.constant 0 : index
    %3 = vector.load %arg4[%c0_5, %c0_6] : memref<1x256xf32, #tpu.memory_space<vmem>>, vector<1x256xf32>
    %c0_7 = arith.constant 0 : index
    %c0_8 = arith.constant 0 : index
    %4 = vector.load %arg5[%c0_7, %c0_8] : memref<1x128xf32, #tpu.memory_space<vmem>>, vector<1x128xf32>
    %cst = arith.constant dense<0.000000e+00> : vector<128x128xf32>
    %5 = tpu.matmul %0, %2, %cst {dimension_numbers = #tpu.dot_dimension_numbers<[1], [0], [0], [1], [0, 0, 1, 1], [], []>} : vector<128x256xf32>, vector<256x128xf32>, vector<128x128xf32> -> vector<128x128xf32>
    %6 = vector.broadcast %4 : vector<1x128xf32> to vector<128x128xf32>
    %7 = arith.addf %5, %6 : vector<128x128xf32>
    %8 = arith.mulf %1, %7 : vector<128x128xf32>
    %cst_9 = arith.constant 5.000000e-01 : f32
    %9 = vector.broadcast %cst_9 : f32 to vector<128x256xf32>
    %10 = arith.mulf %9, %0 : vector<128x256xf32>
    %11 = vector.broadcast %3 : vector<1x256xf32> to vector<128x256xf32>
    %12 = arith.subf %11, %10 : vector<128x256xf32>
    %13 = arith.mulf %0, %12 : vector<128x256xf32>
    %cst_10 = arith.constant 1.000000e+00 : f32
    %14 = vector.broadcast %cst_10 : f32 to vector<1x128xf32>
    %cst_11 = arith.constant 1.000000e+00 : f32
    %15 = vector.broadcast %cst_11 : f32 to vector<1x256xf32>
    %cst_12 = arith.constant dense<0.000000e+00> : vector<1x128xf32>
    %16 = tpu.matmul %14, %8, %cst_12 {dimension_numbers = #tpu.dot_dimension_numbers<[1], [1], [0], [0], [0, 0, 1, 0], [], []>} : vector<1x128xf32>, vector<128x128xf32>, vector<1x128xf32> -> vector<1x128xf32>
    %cst_13 = arith.constant dense<0.000000e+00> : vector<1x128xf32>
    %17 = tpu.matmul %15, %13, %cst_13 {dimension_numbers = #tpu.dot_dimension_numbers<[1], [1], [0], [0], [0, 0, 1, 0], [], []>} : vector<1x256xf32>, vector<128x256xf32>, vector<1x128xf32> -> vector<1x128xf32>
    %18 = arith.addf %16, %17 : vector<1x128xf32>
    %c0_14 = arith.constant 0 : index
    %c0_15 = arith.constant 0 : index
    %19 = vector.load %arg6[%c0_14, %c0_15] : memref<1x128xf32, #tpu.memory_space<vmem>>, vector<1x128xf32>
    tpu.vector_store %arg6[%c0_14, %c0_15], %18 {strides = array<i32>} : memref<1x128xf32, #tpu.memory_space<vmem>>, vector<1x128xf32>,
    return
  }
  func.func @transform_0(%arg0: i32) -> (i32, i32) {
    %c0_i32 = arith.constant 0 : i32
    %c0_i32_0 = arith.constant 0 : i32
    return %arg0, %c0_i32 : i32, i32
  }
  func.func @transform_1(%arg0: i32) -> (i32, i32) {
    %c0_i32 = arith.constant 0 : i32
    %c0_i32_0 = arith.constant 0 : i32
    return %arg0, %c0_i32 : i32, i32
  }
  func.func @transform_2(%arg0: i32) -> (i32, i32) {
    %c0_i32 = arith.constant 0 : i32
    %c0_i32_0 = arith.constant 0 : i32
    %c0_i32_1 = arith.constant 0 : i32
    return %c0_i32, %c0_i32_0 : i32, i32
  }
  func.func @transform_3(%arg0: i32) -> (i32, i32) {
    %c0_i32 = arith.constant 0 : i32
    %c0_i32_0 = arith.constant 0 : i32
    %c0_i32_1 = arith.constant 0 : i32
    return %c0_i32, %c0_i32_0 : i32, i32
  }
  func.func @transform_4(%arg0: i32) -> (i32, i32) {
    %c0_i32 = arith.constant 0 : i32
    %c0_i32_0 = arith.constant 0 : i32
    %c0_i32_1 = arith.constant 0 : i32
    return %c0_i32, %c0_i32_0 : i32, i32
  }
  func.func @transform_5(%arg0: i32) -> (i32, i32) {
    %c0_i32 = arith.constant 0 : i32
    %c0_i32_0 = arith.constant 0 : i32
    return %c0_i32, %arg0 : i32, i32
  }
}

</mosaic_0001>

<llo_original>
// kernel: tpu_custom_call.1
$region0: #{tpu_custom_call.1}
  #allocation0 [shape = 'u32[]', space=smem, size = 0x4, offset = 0x4, fixed_abs, tag = 'smem constant byte address 0x4 - core index']
  #allocation1 [shape = 'u32[72,128]{1,0:T(1,128)}', space=vmem, size = 0x9000, scoped, tag = 'internal scratch']
  %s0 = inlined_call_operand.hbm [shape: f32[512,256], index: 0, kind: input, shape index: {}]
  %s1 = inlined_call_operand.hbm [shape: f32[512,128], index: 1, kind: input, shape index: {}]
  %s2 = inlined_call_operand.hbm [shape: f32[256,128], index: 2, kind: input, shape index: {}]
  %s3 = inlined_call_operand.vmem [shape: f32[1,256], index: 3, kind: input, shape index: {}]
  %s4 = inlined_call_operand.vmem [shape: f32[1,128], index: 4, kind: input, shape index: {}]
  %s5 = inlined_call_operand.hbm [shape: f32[1,512], index: 5, kind: output, shape index: {}]
  %s6 = sld [smem:[#allocation0]]
  $region65: #{tpu_custom_call.1} parent=0
    _
  %s8 = ssub.s32 1, %s6
  %s9 = scalar_select 0, %s8, %s6
  $region1: #{tpu_custom_call.1} parent=0
    #allocation2 [shape = 'u8[262144]{0}', space=vmem, size = 0x40000, scoped, tag = 'input window, operand 0']
    #allocation3 [shape = 's32[2]{0}', space=sflag, size = 0x8, scoped, tag = 'scoped memory for tpu_custom_call.1']
    #allocation4 [shape = 's32[2]{0}', space=sflag, size = 0x8, scoped, tag = 'scoped memory for tpu_custom_call.1']
    #allocation5 [shape = 'u8[131072]{0}', space=vmem, size = 0x20000, scoped, tag = 'input window, operand 1']
    #allocation6 [shape = 's32[2]{0}', space=sflag, size = 0x8, scoped, tag = 'scoped memory for tpu_custom_call.1']
    #allocation7 [shape = 'u8[131072]{0}', space=vmem, size = 0x20000, scoped, tag = 'input window, operand 2, single buffered']
    #allocation8 [shape = 'u8[1024]{0}', space=vmem, size = 0x400, scoped, tag = 'output window, operand 0']
    %10 = vsyncpa [#allocation3], 0
    %s11 = scalar_lea.sflag [#allocation3], 1
    %12 = vsyncpa %s11, 0
    %13 = vsyncpa [#allocation6], 0
    %s14 = scalar_lea.sflag [#allocation6], 1
    %15 = vsyncpa %s14, 0
    %16 = vsyncpa [#allocation4], 0
    %s17 = scalar_lea.sflag [#allocation4], 1
    %18 = vsyncpa %s17, 0
    loop: start=0, step=1, limit=6
    $region2: #{tpu_custom_call.1} parent=1 // loop_pre_header
      _
    $region3: #{tpu_custom_call.1} parent=1 // loop_header
      %s20 = sphi 0, %s24
      %p21 = scmp.ge.s32.totalorder %s20, 6
      %s30 = sphi 0, %s32
      %s33 = sphi 0, %s30
      %s34 = sphi 0, %s33
      %s50 = sphi 0, %s34
      %s56 = sphi 0, %s58
      %s59 = sphi 0, %s56
      %s60 = sphi 0, %s59
      %s76 = sphi 0, %s60
      %s80 = sphi 0, %s80
      %s82 = sphi 0, %s80
      %s83 = sphi 0, %s82
      %s97 = sphi 0, %s83
      %s101 = sphi 0, %s101
      %s103 = sphi 0, %s101
      %s104 = sphi 0, %s103
      %s118 = sphi 0, %s104
      %s122 = sphi 0, %s122
      %s124 = sphi 0, %s122
      %s125 = sphi 0, %s124
      %s139 = sphi 0, %s125
      %s145 = sphi 0, %s147
      %s148 = sphi 0, %s145
      %s149 = sphi 0, %s148
      %s165 = sphi 0, %s149
    $region4: #{tpu_custom_call.1} parent=1 // loop_header_branch
      %23 = sbr.rel (%p21) target = $region8
    $region5: #{tpu_custom_call.1} parent=1 // loop_body
      %s25 = ssub.s32 %s20, 1
      %s26 = ssub.s32 %s20, 2
      %s27 = sadd.s32 %s20, 1
      %s28 = ssub.s32 %s20, %s27
      %p29 = scmp.eq.s32.totalorder %s28, 0
      %s31 = sadd.s32 %s30, 1
      %s32 = scalar_select %p29, %s30, %s31
      %p35 = pneg %p29
      %p36 = scmp.eq.s32.totalorder %s20, 3
      %p37 = por %p35, %p36
      %p38 = scmp.ne.s32.totalorder %s30, %s33
      %p39 = scmp.eq.s32.totalorder %s20, 0
      %p40 = por %p38, %p39
      %p41 = scmp.ne.s32.totalorder %s30, %s33
      %p42 = scmp.eq.s32.totalorder %s25, 3
      %p43 = por %p41, %p42
      %p44 = scmp.ne.s32.totalorder %s33, %s34
      %p45 = scmp.eq.s32.totalorder %s25, 0
      %p46 = por %p44, %p45
      %p47 = scmp.ne.s32.totalorder %s33, %s34
      %p48 = scmp.eq.s32.totalorder %s26, 3
      %p49 = por %p47, %p48
      %p51 = scmp.ne.s32.totalorder %s34, %s50
      %p52 = scmp.eq.s32.totalorder %s26, 0
      %p53 = por %p51, %p52
      %s54 = ssub.s32 %s20, %s27
      %p55 = scmp.eq.s32.totalorder %s54, 0
      %s57 = sadd.s32 %s56, 1
      %s58 = scalar_select %p55, %s56, %s57
      %p61 = pneg %p55
      %p62 = scmp.eq.s32.totalorder %s20, 3
      %p63 = por %p61, %p62
      %p64 = scmp.ne.s32.totalorder %s56, %s59
      %p65 = scmp.eq.s32.totalorder %s20, 0
      %p66 = por %p64, %p65
      %p67 = scmp.ne.s32.totalorder %s56, %s59
      %p68 = scmp.eq.s32.totalorder %s25, 3
      %p69 = por %p67, %p68
      %p70 = scmp.ne.s32.totalorder %s59, %s60
      %p71 = scmp.eq.s32.totalorder %s25, 0
      %p72 = por %p70, %p71
      %p73 = scmp.ne.s32.totalorder %s59, %s60
      %p74 = scmp.eq.s32.totalorder %s26, 3
      %p75 = por %p73, %p74
      %p77 = scmp.ne.s32.totalorder %s60, %s76
      %p78 = scmp.eq.s32.totalorder %s26, 0
      %p79 = por %p77, %p78
      %s81 = sadd.s32 %s80, 1
      %p84 = scmp.eq.s32.totalorder %s20, 3
      %p85 = scmp.ne.s32.totalorder %s80, %s82
      %p86 = scmp.eq.s32.totalorder %s20, 0
      %p87 = por %p85, %p86
      %p88 = scmp.ne.s32.totalorder %s80, %s82
      %p89 = scmp.eq.s32.totalorder %s25, 3
      %p90 = por %p88, %p89
      %p91 = scmp.ne.s32.totalorder %s82, %s83
      %p92 = scmp.eq.s32.totalorder %s25, 0
      %p93 = por %p91, %p92
      %p94 = scmp.ne.s32.totalorder %s82, %s83
      %p95 = scmp.eq.s32.totalorder %s26, 3
      %p96 = por %p94, %p95
      %p98 = scmp.ne.s32.totalorder %s83, %s97
      %p99 = scmp.eq.s32.totalorder %s26, 0
      %p100 = por %p98, %p99
      %s102 = sadd.s32 %s101, 1
      %p105 = scmp.eq.s32.totalorder %s20, 3
      %p106 = scmp.ne.s32.totalorder %s101, %s103
      %p107 = scmp.eq.s32.totalorder %s20, 0
      %p108 = por %p106, %p107
      %p109 = scmp.ne.s32.totalorder %s101, %s103
      %p110 = scmp.eq.s32.totalorder %s25, 3
      %p111 = por %p109, %p110
      %p112 = scmp.ne.s32.totalorder %s103, %s104
      %p113 = scmp.eq.s32.totalorder %s25, 0
      %p114 = por %p112, %p113
      %p115 = scmp.ne.s32.totalorder %s103, %s104
      %p116 = scmp.eq.s32.totalorder %s26, 3
      %p117 = por %p115, %p116
      %p119 = scmp.ne.s32.totalorder %s104, %s118
      %p120 = scmp.eq.s32.totalorder %s26, 0
      %p121 = por %p119, %p120
      %s123 = sadd.s32 %s122, 1
      %p126 = scmp.eq.s32.totalorder %s20, 3
      %p127 = scmp.ne.s32.totalorder %s122, %s124
      %p128 = scmp.eq.s32.totalorder %s20, 0
      %p129 = por %p127, %p128
      %p130 = scmp.ne.s32.totalorder %s122, %s124
      %p131 = scmp.eq.s32.totalorder %s25, 3
      %p132 = por %p130, %p131
      %p133 = scmp.ne.s32.totalorder %s124, %s125
      %p134 = scmp.eq.s32.totalorder %s25, 0
      %p135 = por %p133, %p134
      %p136 = scmp.ne.s32.totalorder %s124, %s125
      %p137 = scmp.eq.s32.totalorder %s26, 3
      %p138 = por %p136, %p137
      %p140 = scmp.ne.s32.totalorder %s125, %s139
      %p141 = scmp.eq.s32.totalorder %s26, 0
      %p142 = por %p140, %p141
      %s143 = ssub.s32 %s20, %s27
      %p144 = scmp.eq.s32.totalorder %s143, 0
      %s146 = sadd.s32 %s145, 1
      %s147 = scalar_select %p144, %s145, %s146
      %p150 = pneg %p144
      %p151 = scmp.eq.s32.totalorder %s20, 3
      %p152 = por %p150, %p151
      %p153 = scmp.ne.s32.totalorder %s145, %s148
      %p154 = scmp.eq.s32.totalorder %s20, 0
      %p155 = por %p153, %p154
      %p156 = scmp.ne.s32.totalorder %s145, %s148
      %p157 = scmp.eq.s32.totalorder %s25, 3
      %p158 = por %p156, %p157
      %p159 = scmp.ne.s32.totalorder %s148, %s149
      %p160 = scmp.eq.s32.totalorder %s25, 0
      %p161 = por %p159, %p160
      %p162 = scmp.ne.s32.totalorder %s148, %s149
      %p163 = scmp.eq.s32.totalorder %s26, 3
      %p164 = por %p162, %p163
      %p166 = scmp.ne.s32.totalorder %s149, %s165
      %p167 = scmp.eq.s32.totalorder %s26, 0
      %p168 = por %p166, %p167
      %p169 = scmp.le.s32.totalorder 1, %s20
      %p170 = scmp.lt.s32.totalorder %s20, 5
      %p171 = pnand %p169, %p170
      %p172 = pneg %p171
      // Predicated region
      $region9: #{tpu_custom_call.1} parent=5 // pred_check
        _
      $region10: #{tpu_custom_call.1} parent=5 // pred_check_branch
        %174 = sbr.rel (%p171) target = $region12
      $region11: #{tpu_custom_call.1} parent=5 // pred_region
        %s175 = ssub.s32 %s20, 1
        // Predicated region
        $region13: #{tpu_custom_call.1} parent=11 // pred_check
          %p176 = pneg %p93
        $region14: #{tpu_custom_call.1} parent=11 // pred_check_branch
          %178 = sbr.rel (%p176) target = $region16
        $region15: #{tpu_custom_call.1} parent=11 // pred_region
          %180 = vsyncadd [#allocation6], 0
          %s181 = sshll.u32 %s2, 4
          %s182 = int_to_ptr.hbm [resolvable:$true] %s181
          %s183 = sshll.u32 [#allocation7], 4
          %s184 = int_to_ptr.vmem [resolvable:$true] %s183
          %189 = dma.hbm_to_vmem [thread:$0]  %s182, 4096, %s184, [#allocation6], 128, 128, 8
        $region16: #{tpu_custom_call.1} parent=11 // pred_fallthru
          _
        // Predicated region
        $region17: #{tpu_custom_call.1} parent=11 // pred_check
          %p190 = pneg %p114
        $region18: #{tpu_custom_call.1} parent=11 // pred_check_branch
          %192 = sbr.rel (%p190) target = $region20
        $region19: #{tpu_custom_call.1} parent=11 // pred_region
          _
        $region20: #{tpu_custom_call.1} parent=11 // pred_fallthru
          _
        // Predicated region
        $region21: #{tpu_custom_call.1} parent=11 // pred_check
          %p193 = pneg %p135
        $region22: #{tpu_custom_call.1} parent=11 // pred_check_branch
          %195 = sbr.rel (%p193) target = $region24
        $region23: #{tpu_custom_call.1} parent=11 // pred_region
          _
        $region24: #{tpu_custom_call.1} parent=11 // pred_fallthru
          _
      $region12: #{tpu_custom_call.1} parent=5 // pred_fallthru
        _
      %p196 = scmp.lt.s32.totalorder %s20, 4
      // Predicated region
      $region25: #{tpu_custom_call.1} parent=5 // pred_check
        %p197 = pneg %p196
      $region26: #{tpu_custom_call.1} parent=5 // pred_check_branch
        %199 = sbr.rel (%p197) target = $region28
      $region27: #{tpu_custom_call.1} parent=5 // pred_region
        // Predicated region
        $region29: #{tpu_custom_call.1} parent=27 // pred_check
          %p200 = pneg %p40
        $region30: #{tpu_custom_call.1} parent=27 // pred_check_branch
          %202 = sbr.rel (%p200) target = $region32
        $region31: #{tpu_custom_call.1} parent=27 // pred_region
          %s203 = sand.u32 %s30, 1
          %s204 = scalar_lea.sflag [#allocation3], %s203
          %s205 = sand.u32 %s30, 1
          %s206 = smul.addr %s205, 256
          %s207 = scalar_lea.vmem [#allocation2], %s206
          %s208 = smul.u32 16, %s20
          %210 = vsyncadd %s204, 0
          %s211 = smul.addr %s208, 2
          %s212 = smul.addr %s211, 8
          %s213 = scalar_lea.hbm %s0, %s212
          %s214 = sshll.u32 %s213, 4
          %s215 = int_to_ptr.hbm [resolvable:$true] %s214
          %s216 = sshll.u32 %s207, 4
          %s217 = int_to_ptr.vmem [resolvable:$true] %s216
          %222 = dma.hbm_to_vmem [thread:$0]  %s215, 4096, %s217, %s204, 256, 256, 16
        $region32: #{tpu_custom_call.1} parent=27 // pred_fallthru
          _
        // Predicated region
        $region33: #{tpu_custom_call.1} parent=27 // pred_check
          %p223 = pneg %p66
        $region34: #{tpu_custom_call.1} parent=27 // pred_check_branch
          %225 = sbr.rel (%p223) target = $region36
        $region35: #{tpu_custom_call.1} parent=27 // pred_region
          %s226 = sand.u32 %s20, 1
          %s227 = scalar_lea.sflag [#allocation6], %s226
          %s228 = sand.u32 %s56, 1
          %s229 = smul.addr %s228, 128
          %s230 = scalar_lea.vmem [#allocation5], %s229
          %s231 = smul.u32 16, %s20
          %233 = vsyncadd %s227, 0
          %s234 = smul.addr %s231, 8
          %s235 = scalar_lea.hbm %s1, %s234
          %s236 = sshll.u32 %s235, 4
          %s237 = int_to_ptr.hbm [resolvable:$true] %s236
          %s238 = sshll.u32 %s230, 4
          %s239 = int_to_ptr.vmem [resolvable:$true] %s238
          %244 = dma.hbm_to_vmem [thread:$0]  %s237, 2048, %s239, %s227, 128, 128, 8
        $region36: #{tpu_custom_call.1} parent=27 // pred_fallthru
          _
      $region28: #{tpu_custom_call.1} parent=5 // pred_fallthru
        _
      %p245 = scmp.le.s32.totalorder 1, %s20
      %p246 = scmp.lt.s32.totalorder %s20, 5
      %p247 = pnand %p245, %p246
      %p248 = pneg %p247
      // Predicated region
      $region37: #{tpu_custom_call.1} parent=5 // pred_check
        _
      $region38: #{tpu_custom_call.1} parent=5 // pred_check_branch
        %250 = sbr.rel (%p247) target = $region40
      $region39: #{tpu_custom_call.1} parent=5 // pred_region
        %s251 = ssub.s32 %s20, 1
        %s252 = sand.u32 %s33, 1
        %s253 = scalar_lea.sflag [#allocation3], %s252
        %s254 = sand.u32 %s33, 1
        %s255 = smul.addr %s254, 256
        %s256 = scalar_lea.vmem [#allocation2], %s255
        // Predicated region
        $region41: #{tpu_custom_call.1} parent=39 // pred_check
          %p257 = pneg %p46
        $region42: #{tpu_custom_call.1} parent=39 // pred_check_branch
          %259 = sbr.rel (%p257) target = $region44
        $region43: #{tpu_custom_call.1} parent=39 // pred_region
          %261 = dma.done %s253, 4096
        $region44: #{tpu_custom_call.1} parent=39 // pred_fallthru
          _
        %s262 = sand.u32 %s25, 1
        %s263 = scalar_lea.sflag [#allocation6], %s262
        %s264 = sand.u32 %s59, 1
        %s265 = smul.addr %s264, 128
        %s266 = scalar_lea.vmem [#allocation5], %s265
        // Predicated region
        $region45: #{tpu_custom_call.1} parent=39 // pred_check
          %p267 = pneg %p72
        $region46: #{tpu_custom_call.1} parent=39 // pred_check_branch
          %269 = sbr.rel (%p267) target = $region48
        $region47: #{tpu_custom_call.1} parent=39 // pred_region
          %271 = dma.done %s263, 2048
        $region48: #{tpu_custom_call.1} parent=39 // pred_fallthru
          _
        // Predicated region
        $region49: #{tpu_custom_call.1} parent=39 // pred_check
          %p272 = pneg %p93
        $region50: #{tpu_custom_call.1} parent=39 // pred_check_branch
          %274 = sbr.rel (%p272) target = $region52
        $region51: #{tpu_custom_call.1} parent=39 // pred_region
          %276 = dma.done [#allocation6], 4096
        $region52: #{tpu_custom_call.1} parent=39 // pred_fallthru
          _
        %s277 = sand.u32 %s33, 1
        %s278 = scalar_lea.sflag [#allocation3], %s277
        %s279 = sand.u32 %s33, 1
        %s280 = smul.addr %s279, 256
        %s281 = scalar_lea.vmem [#allocation2], %s280
        %p282 = pneg %p46
        %p283 = pneg %p43
        %s284 = sand.u32 %s25, 1
        %s285 = scalar_lea.sflag [#allocation6], %s284
        %s286 = sand.u32 %s59, 1
        %s287 = smul.addr %s286, 128
        %s288 = scalar_lea.vmem [#allocation5], %s287
        %p289 = pneg %p72
        %p290 = pneg %p69
        %p291 = pneg %p93
        %p292 = pneg %p90
        %p293 = pneg %p114
        %p294 = pneg %p111
        %p295 = pneg %p135
        %p296 = pneg %p132
        %p297 = pneg %p161
        %p298 = pneg %p158
        %s299 = sand.u32 %s148, 1
        %s300 = scalar_lea.sflag [#allocation4], %s299
        %s301 = sand.u32 %s148, 1
        %s302 = scalar_lea.vmem [#allocation8], %s301
        %s303 = smul.u32 16, %s25
        %s304 = smul.u32 16, %s25
        %v305 = vld [vmem:[%s256] sm:$0xff]
        %v306 = vld [vmem:[%s256 + $0x8] sm:$0xff]
        %v307 = vld [vmem:[%s256 + $0x10] sm:$0xff]
        %v308 = vld [vmem:[%s256 + $0x18] sm:$0xff]
        %v309 = vld [vmem:[%s256 + $0x20] sm:$0xff]
        %v310 = vld [vmem:[%s256 + $0x28] sm:$0xff]
        %v311 = vld [vmem:[%s256 + $0x30] sm:$0xff]
        %v312 = vld [vmem:[%s256 + $0x38] sm:$0xff]
        %v313 = vld [vmem:[%s256 + $0x40] sm:$0xff]
        %v314 = vld [vmem:[%s256 + $0x48] sm:$0xff]
        %v315 = vld [vmem:[%s256 + $0x50] sm:$0xff]
        %v316 = vld [vmem:[%s256 + $0x58] sm:$0xff]
        %v317 = vld [vmem:[%s256 + $0x60] sm:$0xff]
        %v318 = vld [vmem:[%s256 + $0x68] sm:$0xff]
        %v319 = vld [vmem:[%s256 + $0x70] sm:$0xff]
        %v320 = vld [vmem:[%s256 + $0x78] sm:$0xff]
        %v321 = vld [vmem:[%s256 + $0x80] sm:$0xff]
        %v322 = vld [vmem:[%s256 + $0x88] sm:$0xff]
        %v323 = vld [vmem:[%s256 + $0x90] sm:$0xff]
        %v324 = vld [vmem:[%s256 + $0x98] sm:$0xff]
        %v325 = vld [vmem:[%s256 + $0xa0] sm:$0xff]
        %v326 = vld [vmem:[%s256 + $0xa8] sm:$0xff]
        %v327 = vld [vmem:[%s256 + $0xb0] sm:$0xff]
        %v328 = vld [vmem:[%s256 + $0xb8] sm:$0xff]
        %v329 = vld [vmem:[%s256 + $0xc0] sm:$0xff]
        %v330 = vld [vmem:[%s256 + $0xc8] sm:$0xff]
        %v331 = vld [vmem:[%s256 + $0xd0] sm:$0xff]
        %v332 = vld [vmem:[%s256 + $0xd8] sm:$0xff]
        %v333 = vld [vmem:[%s256 + $0xe0] sm:$0xff]
        %v334 = vld [vmem:[%s256 + $0xe8] sm:$0xff]
        %v335 = vld [vmem:[%s256 + $0xf0] sm:$0xff]
        %v336 = vld [vmem:[%s256 + $0xf8] sm:$0xff]
        %v337 = vld [vmem:[%s266] sm:$0xff]
        %v338 = vld [vmem:[%s266 + $0x8] sm:$0xff]
        %v339 = vld [vmem:[%s266 + $0x10] sm:$0xff]
        %v340 = vld [vmem:[%s266 + $0x18] sm:$0xff]
        %v341 = vld [vmem:[%s266 + $0x20] sm:$0xff]
        %v342 = vld [vmem:[%s266 + $0x28] sm:$0xff]
        %v343 = vld [vmem:[%s266 + $0x30] sm:$0xff]
        %v344 = vld [vmem:[%s266 + $0x38] sm:$0xff]
        %v345 = vld [vmem:[%s266 + $0x40] sm:$0xff]
        %v346 = vld [vmem:[%s266 + $0x48] sm:$0xff]
        %v347 = vld [vmem:[%s266 + $0x50] sm:$0xff]
        %v348 = vld [vmem:[%s266 + $0x58] sm:$0xff]
        %v349 = vld [vmem:[%s266 + $0x60] sm:$0xff]
        %v350 = vld [vmem:[%s266 + $0x68] sm:$0xff]
        %v351 = vld [vmem:[%s266 + $0x70] sm:$0xff]
        %v352 = vld [vmem:[%s266 + $0x78] sm:$0xff]
        %v353 = vld [vmem:[#allocation7] sm:$0xff]
        %v354 = vld [vmem:[#allocation7 + $0x8] sm:$0xff]
        %v355 = vld [vmem:[#allocation7 + $0x10] sm:$0xff]
        %v356 = vld [vmem:[#allocation7 + $0x18] sm:$0xff]
        %v357 = vld [vmem:[#allocation7 + $0x20] sm:$0xff]
        %v358 = vld [vmem:[#allocation7 + $0x28] sm:$0xff]
        %v359 = vld [vmem:[#allocation7 + $0x30] sm:$0xff]
        %v360 = vld [vmem:[#allocation7 + $0x38] sm:$0xff]
        %v361 = vld [vmem:[#allocation7 + $0x40] sm:$0xff]
        %v362 = vld [vmem:[#allocation7 + $0x48] sm:$0xff]
        %v363 = vld [vmem:[#allocation7 + $0x50] sm:$0xff]
        %v364 = vld [vmem:[#allocation7 + $0x58] sm:$0xff]
        %v365 = vld [vmem:[#allocation7 + $0x60] sm:$0xff]
        %v366 = vld [vmem:[#allocation7 + $0x68] sm:$0xff]
        %v367 = vld [vmem:[#allocation7 + $0x70] sm:$0xff]
        %v368 = vld [vmem:[#allocation7 + $0x78] sm:$0xff]
        %v369 = vld [vmem:[#allocation7 + $0x80] sm:$0xff]
        %v370 = vld [vmem:[#allocation7 + $0x88] sm:$0xff]
        %v371 = vld [vmem:[#allocation7 + $0x90] sm:$0xff]
        %v372 = vld [vmem:[#allocation7 + $0x98] sm:$0xff]
        %v373 = vld [vmem:[#allocation7 + $0xa0] sm:$0xff]
        %v374 = vld [vmem:[#allocation7 + $0xa8] sm:$0xff]
        %v375 = vld [vmem:[#allocation7 + $0xb0] sm:$0xff]
        %v376 = vld [vmem:[#allocation7 + $0xb8] sm:$0xff]
        %v377 = vld [vmem:[#allocation7 + $0xc0] sm:$0xff]
        %v378 = vld [vmem:[#allocation7 + $0xc8] sm:$0xff]
        %v379 = vld [vmem:[#allocation7 + $0xd0] sm:$0xff]
        %v380 = vld [vmem:[#allocation7 + $0xd8] sm:$0xff]
        %v381 = vld [vmem:[#allocation7 + $0xe0] sm:$0xff]
        %v382 = vld [vmem:[#allocation7 + $0xe8] sm:$0xff]
        %v383 = vld [vmem:[#allocation7 + $0xf0] sm:$0xff]
        %v384 = vld [vmem:[#allocation7 + $0xf8] sm:$0xff]
        %v385 = vld [vmem:[%s3] sm:$0x3]
        %v386 = vld [vmem:[%s4] sm:$0x1]
        %v388 = vperm.slane %v386, 0
        %390 = vmatpush.msra.mxu0 %v368
        %391 = vmatpush.msra.mxu0 %v367
        %392 = vmatpush.msra.mxu0 %v366
        %393 = vmatpush.msra.mxu0 %v365
        %394 = vmatpush.msra.mxu0 %v364
        %395 = vmatpush.msra.mxu0 %v363
        %396 = vmatpush.msra.mxu0 %v362
        %397 = vmatpush.msra.mxu0 %v361
        %398 = vmatpush.msra.mxu0 %v360
        %399 = vmatpush.msra.mxu0 %v359
        %400 = vmatpush.msra.mxu0 %v358
        %401 = vmatpush.msra.mxu0 %v357
        %402 = vmatpush.msra.mxu0 %v356
        %403 = vmatpush.msra.mxu0 %v355
        %404 = vmatpush.msra.mxu0 %v354
        %405 = vmatpush.msra.mxu0 %v353
        %406 = vmatmul.f32.gmra.mxu0 %v305
        %v407 = vpop.f32.mrf.mxu0
        %v408 = vadd.f32 %v388, %v407
        %409 = vmatmul.f32.gmra.mxu0 %v307
        %v410 = vpop.f32.mrf.mxu0
        %v411 = vadd.f32 %v388, %v410
        %412 = vmatmul.f32.gmra.mxu0 %v309
        %v413 = vpop.f32.mrf.mxu0
        %v414 = vadd.f32 %v388, %v413
        %415 = vmatmul.f32.gmra.mxu0 %v311
        %v416 = vpop.f32.mrf.mxu0
        %v417 = vadd.f32 %v388, %v416
        %418 = vmatmul.f32.gmra.mxu0 %v313
        %v419 = vpop.f32.mrf.mxu0
        %v420 = vadd.f32 %v388, %v419
        %421 = vmatmul.f32.gmra.mxu0 %v315
        %v422 = vpop.f32.mrf.mxu0
        %v423 = vadd.f32 %v388, %v422
        %424 = vmatmul.f32.gmra.mxu0 %v317
        %v425 = vpop.f32.mrf.mxu0
        %v426 = vadd.f32 %v388, %v425
        %427 = vmatmul.f32.gmra.mxu0 %v319
        %v428 = vpop.f32.mrf.mxu0
        %v429 = vadd.f32 %v388, %v428
        %430 = vmatmul.f32.gmra.mxu0 %v321
        %v431 = vpop.f32.mrf.mxu0
        %v432 = vadd.f32 %v388, %v431
        %433 = vmatmul.f32.gmra.mxu0 %v323
        %v434 = vpop.f32.mrf.mxu0
        %v435 = vadd.f32 %v388, %v434
        %436 = vmatmul.f32.gmra.mxu0 %v325
        %v437 = vpop.f32.mrf.mxu0
        %v438 = vadd.f32 %v388, %v437
        %439 = vmatmul.f32.gmra.mxu0 %v327
        %v440 = vpop.f32.mrf.mxu0
        %v441 = vadd.f32 %v388, %v440
        %442 = vmatmul.f32.gmra.mxu0 %v329
        %v443 = vpop.f32.mrf.mxu0
        %v444 = vadd.f32 %v388, %v443
        %445 = vmatmul.f32.gmra.mxu0 %v331
        %v446 = vpop.f32.mrf.mxu0
        %v447 = vadd.f32 %v388, %v446
        %448 = vmatmul.f32.gmra.mxu0 %v333
        %v449 = vpop.f32.mrf.mxu0
        %v450 = vadd.f32 %v388, %v449
        %451 = vmatmul.f32.gmra.mxu0 %v335
        %v452 = vpop.f32.mrf.mxu0
        %v453 = vadd.f32 %v388, %v452
        %454 = vdwg.mxu0
        %455 = vmatpush.msra.mxu0 %v384
        %456 = vmatpush.msra.mxu0 %v383
        %457 = vmatpush.msra.mxu0 %v382
        %458 = vmatpush.msra.mxu0 %v381
        %459 = vmatpush.msra.mxu0 %v380
        %460 = vmatpush.msra.mxu0 %v379
        %461 = vmatpush.msra.mxu0 %v378
        %462 = vmatpush.msra.mxu0 %v377
        %463 = vmatpush.msra.mxu0 %v376
        %464 = vmatpush.msra.mxu0 %v375
        %465 = vmatpush.msra.mxu0 %v374
        %466 = vmatpush.msra.mxu0 %v373
        %467 = vmatpush.msra.mxu0 %v372
        %468 = vmatpush.msra.mxu0 %v371
        %469 = vmatpush.msra.mxu0 %v370
        %470 = vmatpush.msra.mxu0 %v369
        %471 = vmatmul.f32.gmra.mxu0 %v306
        %v472 = vpop.f32.mrf.mxu0
        %v473 = vadd.f32 %v408, %v472
        %474 = vmatmul.f32.gmra.mxu0 %v308
        %v475 = vpop.f32.mrf.mxu0
        %v476 = vadd.f32 %v411, %v475
        %477 = vmatmul.f32.gmra.mxu0 %v310
        %v478 = vpop.f32.mrf.mxu0
        %v479 = vadd.f32 %v414, %v478
        %480 = vmatmul.f32.gmra.mxu0 %v312
        %v481 = vpop.f32.mrf.mxu0
        %v482 = vadd.f32 %v417, %v481
        %483 = vmatmul.f32.gmra.mxu0 %v314
        %v484 = vpop.f32.mrf.mxu0
        %v485 = vadd.f32 %v420, %v484
        %486 = vmatmul.f32.gmra.mxu0 %v316
        %v487 = vpop.f32.mrf.mxu0
        %v488 = vadd.f32 %v423, %v487
        %489 = vmatmul.f32.gmra.mxu0 %v318
        %v490 = vpop.f32.mrf.mxu0
        %v491 = vadd.f32 %v426, %v490
        %492 = vmatmul.f32.gmra.mxu0 %v320
        %v493 = vpop.f32.mrf.mxu0
        %v494 = vadd.f32 %v429, %v493
        %495 = vmatmul.f32.gmra.mxu0 %v322
        %v496 = vpop.f32.mrf.mxu0
        %v497 = vadd.f32 %v432, %v496
        %498 = vmatmul.f32.gmra.mxu0 %v324
        %v499 = vpop.f32.mrf.mxu0
        %v500 = vadd.f32 %v435, %v499
        %501 = vmatmul.f32.gmra.mxu0 %v326
        %v502 = vpop.f32.mrf.mxu0
        %v503 = vadd.f32 %v438, %v502
        %504 = vmatmul.f32.gmra.mxu0 %v328
        %v505 = vpop.f32.mrf.mxu0
        %v506 = vadd.f32 %v441, %v505
        %507 = vmatmul.f32.gmra.mxu0 %v330
        %v508 = vpop.f32.mrf.mxu0
        %v509 = vadd.f32 %v444, %v508
        %510 = vmatmul.f32.gmra.mxu0 %v332
        %v511 = vpop.f32.mrf.mxu0
        %v512 = vadd.f32 %v447, %v511
        %513 = vmatmul.f32.gmra.mxu0 %v334
        %v514 = vpop.f32.mrf.mxu0
        %v515 = vadd.f32 %v450, %v514
        %516 = vmatmul.f32.gmra.mxu0 %v336
        %v517 = vpop.f32.mrf.mxu0
        %v518 = vadd.f32 %v453, %v517
        %519 = vdwg.mxu0
        %v520 = vmul.f32 %v337, %v473
        %v521 = vmul.f32 %v338, %v476
        %v522 = vmul.f32 %v339, %v479
        %v523 = vmul.f32 %v340, %v482
        %v524 = vmul.f32 %v341, %v485
        %v525 = vmul.f32 %v342, %v488
        %v526 = vmul.f32 %v343, %v491
        %v527 = vmul.f32 %v344, %v494
        %v528 = vmul.f32 %v345, %v497
        %v529 = vmul.f32 %v346, %v500
        %v530 = vmul.f32 %v347, %v503
        %v531 = vmul.f32 %v348, %v506
        %v532 = vmul.f32 %v349, %v509
        %v533 = vmul.f32 %v350, %v512
        %v534 = vmul.f32 %v351, %v515
        %v535 = vmul.f32 %v352, %v518
        %v536 = vmul.f32 %v305, 0.5
        %v537 = vmul.f32 %v306, 0.5
        %v538 = vmul.f32 %v307, 0.5
        %v539 = vmul.f32 %v308, 0.5
        %v540 = vmul.f32 %v309, 0.5
        %v541 = vmul.f32 %v310, 0.5
        %v542 = vmul.f32 %v311, 0.5
        %v543 = vmul.f32 %v312, 0.5
        %v544 = vmul.f32 %v313, 0.5
        %v545 = vmul.f32 %v314, 0.5
        %v546 = vmul.f32 %v315, 0.5
        %v547 = vmul.f32 %v316, 0.5
        %v548 = vmul.f32 %v317, 0.5
        %v549 = vmul.f32 %v318, 0.5
        %v550 = vmul.f32 %v319, 0.5
        %v551 = vmul.f32 %v320, 0.5
        %v552 = vmul.f32 %v321, 0.5
        %v553 = vmul.f32 %v322, 0.5
        %v554 = vmul.f32 %v323, 0.5
        %v555 = vmul.f32 %v324, 0.5
        %v556 = vmul.f32 %v325, 0.5
        %v557 = vmul.f32 %v326, 0.5
        %v558 = vmul.f32 %v327, 0.5
        %v559 = vmul.f32 %v328, 0.5
        %v560 = vmul.f32 %v329, 0.5
        %v561 = vmul.f32 %v330, 0.5
        %v562 = vmul.f32 %v331, 0.5
        %v563 = vmul.f32 %v332, 0.5
        %v564 = vmul.f32 %v333, 0.5
        %v565 = vmul.f32 %v334, 0.5
        %v566 = vmul.f32 %v335, 0.5
        %v567 = vmul.f32 %v336, 0.5
        %v569 = vperm.slane %v385, 0
        %v570 = vperm.slane %v385, 1
        %v573 = vsub.f32 %v569, %v536
        %v574 = vsub.f32 %v570, %v537
        %v575 = vsub.f32 %v569, %v538
        %v576 = vsub.f32 %v570, %v539
        %v577 = vsub.f32 %v569, %v540
        %v578 = vsub.f32 %v570, %v541
        %v579 = vsub.f32 %v569, %v542
        %v580 = vsub.f32 %v570, %v543
        %v581 = vsub.f32 %v569, %v544
        %v582 = vsub.f32 %v570, %v545
        %v583 = vsub.f32 %v569, %v546
        %v584 = vsub.f32 %v570, %v547
        %v585 = vsub.f32 %v569, %v548
        %v586 = vsub.f32 %v570, %v549
        %v587 = vsub.f32 %v569, %v550
        %v588 = vsub.f32 %v570, %v551
        %v589 = vsub.f32 %v569, %v552
        %v590 = vsub.f32 %v570, %v553
        %v591 = vsub.f32 %v569, %v554
        %v592 = vsub.f32 %v570, %v555
        %v593 = vsub.f32 %v569, %v556
        %v594 = vsub.f32 %v570, %v557
        %v595 = vsub.f32 %v569, %v558
        %v596 = vsub.f32 %v570, %v559
        %v597 = vsub.f32 %v569, %v560
        %v598 = vsub.f32 %v570, %v561
        %v599 = vsub.f32 %v569, %v562
        %v600 = vsub.f32 %v570, %v563
        %v601 = vsub.f32 %v569, %v564
        %v602 = vsub.f32 %v570, %v565
        %v603 = vsub.f32 %v569, %v566
        %v604 = vsub.f32 %v570, %v567
        %v605 = vmul.f32 %v305, %v573
        %v606 = vmul.f32 %v306, %v574
        %v607 = vmul.f32 %v307, %v575
        %v608 = vmul.f32 %v308, %v576
        %v609 = vmul.f32 %v309, %v577
        %v610 = vmul.f32 %v310, %v578
        %v611 = vmul.f32 %v311, %v579
        %v612 = vmul.f32 %v312, %v580
        %v613 = vmul.f32 %v313, %v581
        %v614 = vmul.f32 %v314, %v582
        %v615 = vmul.f32 %v315, %v583
        %v616 = vmul.f32 %v316, %v584
        %v617 = vmul.f32 %v317, %v585
        %v618 = vmul.f32 %v318, %v586
        %v619 = vmul.f32 %v319, %v587
        %v620 = vmul.f32 %v320, %v588
        %v621 = vmul.f32 %v321, %v589
        %v622 = vmul.f32 %v322, %v590
        %v623 = vmul.f32 %v323, %v591
        %v624 = vmul.f32 %v324, %v592
        %v625 = vmul.f32 %v325, %v593
        %v626 = vmul.f32 %v326, %v594
        %v627 = vmul.f32 %v327, %v595
        %v628 = vmul.f32 %v328, %v596
        %v629 = vmul.f32 %v329, %v597
        %v630 = vmul.f32 %v330, %v598
        %v631 = vmul.f32 %v331, %v599
        %v632 = vmul.f32 %v332, %v600
        %v633 = vmul.f32 %v333, %v601
        %v634 = vmul.f32 %v334, %v602
        %v635 = vmul.f32 %v335, %v603
        %v636 = vmul.f32 %v336, %v604
        %637 = vmatpush.xpose.msra.mxu0 %v635
        %638 = vmatpush.xpose.msra.mxu0 %v633
        %639 = vmatpush.xpose.msra.mxu0 %v631
        %640 = vmatpush.xpose.msra.mxu0 %v629
        %641 = vmatpush.xpose.msra.mxu0 %v627
        %642 = vmatpush.xpose.msra.mxu0 %v625
        %643 = vmatpush.xpose.msra.mxu0 %v623
        %644 = vmatpush.xpose.msra.mxu0 %v621
        %645 = vmatpush.xpose.msra.mxu0 %v619
        %646 = vmatpush.xpose.msra.mxu0 %v617
        %647 = vmatpush.xpose.msra.mxu0 %v615
        %648 = vmatpush.xpose.msra.mxu0 %v613
        %649 = vmatpush.xpose.msra.mxu0 %v611
        %650 = vmatpush.xpose.msra.mxu0 %v609
        %651 = vmatpush.xpose.msra.mxu0 %v607
        %652 = vmatpush.xpose.msra.mxu0 %v605
        %653 = vmatmul.f32.gmra.mxu0 1.0
        %v654 = vpop.f32.mrf.mxu0
        %v655 = vadd.f32 0.0, %v654
        %656 = vdwg.mxu0
        %657 = vmatpush.xpose.msra.mxu0 %v636
        %658 = vmatpush.xpose.msra.mxu0 %v634
        %659 = vmatpush.xpose.msra.mxu0 %v632
        %660 = vmatpush.xpose.msra.mxu0 %v630
        %661 = vmatpush.xpose.msra.mxu0 %v628
        %662 = vmatpush.xpose.msra.mxu0 %v626
        %663 = vmatpush.xpose.msra.mxu0 %v624
        %664 = vmatpush.xpose.msra.mxu0 %v622
        %665 = vmatpush.xpose.msra.mxu0 %v620
        %666 = vmatpush.xpose.msra.mxu0 %v618
        %667 = vmatpush.xpose.msra.mxu0 %v616
        %668 = vmatpush.xpose.msra.mxu0 %v614
        %669 = vmatpush.xpose.msra.mxu0 %v612
        %670 = vmatpush.xpose.msra.mxu0 %v610
        %671 = vmatpush.xpose.msra.mxu0 %v608
        %672 = vmatpush.xpose.msra.mxu0 %v606
        %673 = vmatmul.f32.gmra.mxu0 1.0
        %v674 = vpop.f32.mrf.mxu0
        %v675 = vadd.f32 %v655, %v674
        %676 = vdwg.mxu0
        %677 = vmatpush.xpose.msra.mxu0 %v535
        %678 = vmatpush.xpose.msra.mxu0 %v534
        %679 = vmatpush.xpose.msra.mxu0 %v533
        %680 = vmatpush.xpose.msra.mxu0 %v532
        %681 = vmatpush.xpose.msra.mxu0 %v531
        %682 = vmatpush.xpose.msra.mxu0 %v530
        %683 = vmatpush.xpose.msra.mxu0 %v529
        %684 = vmatpush.xpose.msra.mxu0 %v528
        %685 = vmatpush.xpose.msra.mxu0 %v527
        %686 = vmatpush.xpose.msra.mxu0 %v526
        %687 = vmatpush.xpose.msra.mxu0 %v525
        %688 = vmatpush.xpose.msra.mxu0 %v524
        %689 = vmatpush.xpose.msra.mxu0 %v523
        %690 = vmatpush.xpose.msra.mxu0 %v522
        %691 = vmatpush.xpose.msra.mxu0 %v521
        %692 = vmatpush.xpose.msra.mxu0 %v520
        %693 = vmatmul.f32.gmra.mxu0 1.0
        %v694 = vpop.f32.mrf.mxu0
        %v695 = vadd.f32 %v675, %v694
        %696 = vdwg.mxu0
        %697 = vst [vmem:[%s302] sm:$0x1] %v695
        %s698 = sand.u32 %s148, 1
        %s699 = scalar_lea.sflag [#allocation4], %s698
        %s700 = sand.u32 %s148, 1
        %s701 = scalar_lea.vmem [#allocation8], %s700
        // Predicated region
        $region53: #{tpu_custom_call.1} parent=39 // pred_check
          %p702 = pneg %p158
        $region54: #{tpu_custom_call.1} parent=39 // pred_check_branch
          %704 = sbr.rel (%p702) target = $region56
        $region55: #{tpu_custom_call.1} parent=39 // pred_region
          %706 = vsyncadd %s699, 0
          %s707 = scalar_lea.hbm %s5, %s25
          %s709 = sshll.u32 %s701, 4
          %s710 = int_to_ptr.vmem [resolvable:$true] %s709
          %s711 = sshll.u32 %s707, 4
          %s712 = int_to_ptr.hbm [resolvable:$true] %s711
          %714 = dma.vmem_to_hbm [thread:$0]  %s710, 16, %s712, %s699
        $region56: #{tpu_custom_call.1} parent=39 // pred_fallthru
          _
      $region40: #{tpu_custom_call.1} parent=5 // pred_fallthru
        _
      %p715 = scmp.le.s32.totalorder 2, %s20
      // Predicated region
      $region57: #{tpu_custom_call.1} parent=5 // pred_check
        %p716 = pneg %p715
      $region58: #{tpu_custom_call.1} parent=5 // pred_check_branch
        %718 = sbr.rel (%p716) target = $region60
      $region59: #{tpu_custom_call.1} parent=5 // pred_region
        %s719 = ssub.s32 %s20, 2
        // Predicated region
        $region61: #{tpu_custom_call.1} parent=59 // pred_check
          %p720 = pneg %p164
        $region62: #{tpu_custom_call.1} parent=59 // pred_check_branch
          %722 = sbr.rel (%p720) target = $region64
        $region63: #{tpu_custom_call.1} parent=59 // pred_region
          %s723 = sand.u32 %s149, 1
          %s724 = scalar_lea.sflag [#allocation4], %s723
          %s725 = sand.u32 %s149, 1
          %s726 = scalar_lea.vmem [#allocation8], %s725
          %728 = dma.done %s724, 16
        $region64: #{tpu_custom_call.1} parent=59 // pred_fallthru
          _
      $region60: #{tpu_custom_call.1} parent=5 // pred_fallthru
        _
    $region6: #{tpu_custom_call.1} parent=1 // loop_footer
      %s24 = sadd.s32 1, %s20
    $region7: #{tpu_custom_call.1} parent=1 // loop_footer_branch
      %19 = sbr.rel target = $region3
    $region8: #{tpu_custom_call.1} parent=1 // loop_exit
      _
    %729 = vsyncpa [#allocation3], 1
    %s730 = scalar_lea.sflag [#allocation3], 1
    %731 = vsyncpa %s730, 1
    %732 = vsyncpa [#allocation6], 1
    %s733 = scalar_lea.sflag [#allocation6], 1
    %734 = vsyncpa %s733, 1
    %735 = vsyncpa [#allocation4], 1
    %s736 = scalar_lea.sflag [#allocation4], 1
    %737 = vsyncpa %s736, 1

// kernel: tpu_custom_call.1
$region0: #{tpu_custom_call.1}
  #allocation0 [shape = 'u32[]', space=smem, size = 0x4, offset = 0x4, fixed_abs, tag = 'smem constant byte address 0x4 - core index']
  #allocation1 [shape = 'u32[72,128]{1,0:T(1,128)}', space=vmem, size = 0x9000, scoped, tag = 'internal scratch']
  %s0 = inlined_call_operand.hbm [shape: f32[512,256], index: 0, kind: input, shape index: {}]
  %s1 = inlined_call_operand.hbm [shape: f32[512,128], index: 1, kind: input, shape index: {}]
  %s2 = inlined_call_operand.hbm [shape: f32[256,128], index: 2, kind: input, shape index: {}]
  %s3 = inlined_call_operand.vmem [shape: f32[1,256], index: 3, kind: input, shape index: {}]
  %s4 = inlined_call_operand.vmem [shape: f32[1,128], index: 4, kind: input, shape index: {}]
  %s5 = inlined_call_operand.hbm [shape: f32[1,512], index: 5, kind: output, shape index: {}]
  %s6 = sld [smem:[#allocation0]]
  $region65: #{tpu_custom_call.1} parent=0
    _
  %s8 = ssub.s32 1, %s6
  %s9 = scalar_select 0, %s8, %s6
  $region1: #{tpu_custom_call.1} parent=0
    #allocation2 [shape = 'u8[262144]{0}', space=vmem, size = 0x40000, scoped, tag = 'input window, operand 0']
    #allocation3 [shape = 's32[2]{0}', space=sflag, size = 0x8, scoped, tag = 'scoped memory for tpu_custom_call.1']
    #allocation4 [shape = 's32[2]{0}', space=sflag, size = 0x8, scoped, tag = 'scoped memory for tpu_custom_call.1']
    #allocation5 [shape = 'u8[131072]{0}', space=vmem, size = 0x20000, scoped, tag = 'input window, operand 1']
    #allocation6 [shape = 's32[2]{0}', space=sflag, size = 0x8, scoped, tag = 'scoped memory for tpu_custom_call.1']
    #allocation7 [shape = 'u8[131072]{0}', space=vmem, size = 0x20000, scoped, tag = 'input window, operand 2, single buffered']
    #allocation8 [shape = 'u8[1024]{0}', space=vmem, size = 0x400, scoped, tag = 'output window, operand 0']
    %10 = vsyncpa [#allocation3], 0
    %s11 = scalar_lea.sflag [#allocation3], 1
    %12 = vsyncpa %s11, 0
    %13 = vsyncpa [#allocation6], 0
    %s14 = scalar_lea.sflag [#allocation6], 1
    %15 = vsyncpa %s14, 0
    %16 = vsyncpa [#allocation4], 0
    %s17 = scalar_lea.sflag [#allocation4], 1
    %18 = vsyncpa %s17, 0
    loop: start=0, step=1, limit=6
    $region2: #{tpu_custom_call.1} parent=1 // loop_pre_header
      _
    $region3: #{tpu_custom_call.1} parent=1 // loop_header
      %s20 = sphi 0, %s24
      %p21 = scmp.ge.s32.totalorder %s20, 6
      %s30 = sphi 0, %s32
      %s33 = sphi 0, %s30
      %s34 = sphi 0, %s33
      %s50 = sphi 0, %s34
      %s56 = sphi 0, %s58
      %s59 = sphi 0, %s56
      %s60 = sphi 0, %s59
      %s76 = sphi 0, %s60
      %s80 = sphi 0, %s80
      %s82 = sphi 0, %s80
      %s83 = sphi 0, %s82
      %s97 = sphi 0, %s83
      %s101 = sphi 0, %s101
      %s103 = sphi 0, %s101
      %s104 = sphi 0, %s103
      %s118 = sphi 0, %s104
      %s122 = sphi 0, %s122
      %s124 = sphi 0, %s122
      %s125 = sphi 0, %s124
      %s139 = sphi 0, %s125
      %s145 = sphi 0, %s147
      %s148 = sphi 0, %s145
      %s149 = sphi 0, %s148
      %s165 = sphi 0, %s149
    $region4: #{tpu_custom_call.1} parent=1 // loop_header_branch
      %23 = sbr.rel (%p21) target = $region8
    $region5: #{tpu_custom_call.1} parent=1 // loop_body
      %s25 = ssub.s32 %s20, 1
      %s26 = ssub.s32 %s20, 2
      %s27 = sadd.s32 %s20, 1
      %s28 = ssub.s32 %s20, %s27
      %p29 = scmp.eq.s32.totalorder %s28, 0
      %s31 = sadd.s32 %s30, 1
      %s32 = scalar_select %p29, %s30, %s31
      %p35 = pneg %p29
      %p36 = scmp.eq.s32.totalorder %s20, 3
      %p37 = por %p35, %p36
      %p38 = scmp.ne.s32.totalorder %s30, %s33
      %p39 = scmp.eq.s32.totalorder %s20, 0
      %p40 = por %p38, %p39
      %p41 = scmp.ne.s32.totalorder %s30, %s33
      %p42 = scmp.eq.s32.totalorder %s25, 3
      %p43 = por %p41, %p42
      %p44 = scmp.ne.s32.totalorder %s33, %s34
      %p45 = scmp.eq.s32.totalorder %s25, 0
      %p46 = por %p44, %p45
      %p47 = scmp.ne.s32.totalorder %s33, %s34
      %p48 = scmp.eq.s32.totalorder %s26, 3
      %p49 = por %p47, %p48
      %p51 = scmp.ne.s32.totalorder %s34, %s50
      %p52 = scmp.eq.s32.totalorder %s26, 0
      %p53 = por %p51, %p52
      %s54 = ssub.s32 %s20, %s27
      %p55 = scmp.eq.s32.totalorder %s54, 0
      %s57 = sadd.s32 %s56, 1
      %s58 = scalar_select %p55, %s56, %s57
      %p61 = pneg %p55
      %p62 = scmp.eq.s32.totalorder %s20, 3
      %p63 = por %p61, %p62
      %p64 = scmp.ne.s32.totalorder %s56, %s59
      %p65 = scmp.eq.s32.totalorder %s20, 0
      %p66 = por %p64, %p65
      %p67 = scmp.ne.s32.totalorder %s56, %s59
      %p68 = scmp.eq.s32.totalorder %s25, 3
      %p69 = por %p67, %p68
      %p70 = scmp.ne.s32.totalorder %s59, %s60
      %p71 = scmp.eq.s32.totalorder %s25, 0
      %p72 = por %p70, %p71
      %p73 = scmp.ne.s32.totalorder %s59, %s60
      %p74 = scmp.eq.s32.totalorder %s26, 3
      %p75 = por %p73, %p74
      %p77 = scmp.ne.s32.totalorder %s60, %s76
      %p78 = scmp.eq.s32.totalorder %s26, 0
      %p79 = por %p77, %p78
      %s81 = sadd.s32 %s80, 1
      %p84 = scmp.eq.s32.totalorder %s20, 3
      %p85 = scmp.ne.s32.totalorder %s80, %s82
      %p86 = scmp.eq.s32.totalorder %s20, 0
      %p87 = por %p85, %p86
      %p88 = scmp.ne.s32.totalorder %s80, %s82
      %p89 = scmp.eq.s32.totalorder %s25, 3
      %p90 = por %p88, %p89
      %p91 = scmp.ne.s32.totalorder %s82, %s83
      %p92 = scmp.eq.s32.totalorder %s25, 0
      %p93 = por %p91, %p92
      %p94 = scmp.ne.s32.totalorder %s82, %s83
      %p95 = scmp.eq.s32.totalorder %s26, 3
      %p96 = por %p94, %p95
      %p98 = scmp.ne.s32.totalorder %s83, %s97
      %p99 = scmp.eq.s32.totalorder %s26, 0
      %p100 = por %p98, %p99
      %s102 = sadd.s32 %s101, 1
      %p105 = scmp.eq.s32.totalorder %s20, 3
      %p106 = scmp.ne.s32.totalorder %s101, %s103
      %p107 = scmp.eq.s32.totalorder %s20, 0
      %p108 = por %p106, %p107
      %p109 = scmp.ne.s32.totalorder %s101, %s103
      %p110 = scmp.eq.s32.totalorder %s25, 3
      %p111 = por %p109, %p110
      %p112 = scmp.ne.s32.totalorder %s103, %s104
      %p113 = scmp.eq.s32.totalorder %s25, 0
      %p114 = por %p112, %p113
      %p115 = scmp.ne.s32.totalorder %s103, %s104
      %p116 = scmp.eq.s32.totalorder %s26, 3
      %p117 = por %p115, %p116
      %p119 = scmp.ne.s32.totalorder %s104, %s118
      %p120 = scmp.eq.s32.totalorder %s26, 0
      %p121 = por %p119, %p120
      %s123 = sadd.s32 %s122, 1
      %p126 = scmp.eq.s32.totalorder %s20, 3
      %p127 = scmp.ne.s32.totalorder %s122, %s124
      %p128 = scmp.eq.s32.totalorder %s20, 0
      %p129 = por %p127, %p128
      %p130 = scmp.ne.s32.totalorder %s122, %s124
      %p131 = scmp.eq.s32.totalorder %s25, 3
      %p132 = por %p130, %p131
      %p133 = scmp.ne.s32.totalorder %s124, %s125
      %p134 = scmp.eq.s32.totalorder %s25, 0
      %p135 = por %p133, %p134
      %p136 = scmp.ne.s32.totalorder %s124, %s125
      %p137 = scmp.eq.s32.totalorder %s26, 3
      %p138 = por %p136, %p137
      %p140 = scmp.ne.s32.totalorder %s125, %s139
      %p141 = scmp.eq.s32.totalorder %s26, 0
      %p142 = por %p140, %p141
      %s143 = ssub.s32 %s20, %s27
      %p144 = scmp.eq.s32.totalorder %s143, 0
      %s146 = sadd.s32 %s145, 1
      %s147 = scalar_select %p144, %s145, %s146
      %p150 = pneg %p144
      %p151 = scmp.eq.s32.totalorder %s20, 3
      %p152 = por %p150, %p151
      %p153 = scmp.ne.s32.totalorder %s145, %s148
      %p154 = scmp.eq.s32.totalorder %s20, 0
      %p155 = por %p153, %p154
      %p156 = scmp.ne.s32.totalorder %s145, %s148
      %p157 = scmp.eq.s32.totalorder %s25, 3
      %p158 = por %p156, %p157
      %p159 = scmp.ne.s32.totalorder %s148, %s149
      %p160 = scmp.eq.s32.totalorder %s25, 0
      %p161 = por %p159, %p160
      %p162 = scmp.ne.s32.totalorder %s148, %s149
      %p163 = scmp.eq.s32.totalorder %s26, 3
      %p164 = por %p162, %p163
      %p166 = scmp.ne.s32.totalorder %s149, %s165
      %p167 = scmp.eq.s32.totalorder %s26, 0
      %p168 = por %p166, %p167
      %p169 = scmp.le.s32.totalorder 1, %s20
      %p170 = scmp.lt.s32.totalorder %s20, 5
      %p171 = pnand %p169, %p170
      %p172 = pneg %p171
      // Predicated region
      $region9: #{tpu_custom_call.1} parent=5 // pred_check
        _
      $region10: #{tpu_custom_call.1} parent=5 // pred_check_branch
        %174 = sbr.rel (%p171) target = $region12
      $region11: #{tpu_custom_call.1} parent=5 // pred_region
        %s175 = ssub.s32 %s20, 1
        // Predicated region
        $region13: #{tpu_custom_call.1} parent=11 // pred_check
          %p176 = pneg %p93
        $region14: #{tpu_custom_call.1} parent=11 // pred_check_branch
          %178 = sbr.rel (%p176) target = $region16
        $region15: #{tpu_custom_call.1} parent=11 // pred_region
          %180 = vsyncadd [#allocation6], 0
          %s181 = sshll.u32 %s2, 4
          %s182 = int_to_ptr.hbm [resolvable:$true] %s181
          %s183 = sshll.u32 [#allocation7], 4
          %s184 = int_to_ptr.vmem [resolvable:$true] %s183
          %189 = dma.hbm_to_vmem [thread:$0]  %s182, 4096, %s184, [#allocation6], 128, 128, 8
        $region16: #{tpu_custom_call.1} parent=11 // pred_fallthru
          _
        // Predicated region
        $region17: #{tpu_custom_call.1} parent=11 // pred_check
          %p190 = pneg %p114
        $region18: #{tpu_custom_call.1} parent=11 // pred_check_branch
          %192 = sbr.rel (%p190) target = $region20
        $region19: #{tpu_custom_call.1} parent=11 // pred_region
          _
        $region20: #{tpu_custom_call.1} parent=11 // pred_fallthru
          _
        // Predicated region
        $region21: #{tpu_custom_call.1} parent=11 // pred_check
          %p193 = pneg %p135
        $region22: #{tpu_custom_call.1} parent=11 // pred_check_branch
          %195 = sbr.rel (%p193) target = $region24
        $region23: #{tpu_custom_call.1} parent=11 // pred_region
          _
        $region24: #{tpu_custom_call.1} parent=11 // pred_fallthru
          _
      $region12: #{tpu_custom_call.1} parent=5 // pred_fallthru
        _
      %p196 = scmp.lt.s32.totalorder %s20, 4
      // Predicated region
      $region25: #{tpu_custom_call.1} parent=5 // pred_check
        %p197 = pneg %p196
      $region26: #{tpu_custom_call.1} parent=5 // pred_check_branch
        %199 = sbr.rel (%p197) target = $region28
      $region27: #{tpu_custom_call.1} parent=5 // pred_region
        // Predicated region
        $region29: #{tpu_custom_call.1} parent=27 // pred_check
          %p200 = pneg %p40
        $region30: #{tpu_custom_call.1} parent=27 // pred_check_branch
          %202 = sbr.rel (%p200) target = $region32
        $region31: #{tpu_custom_call.1} parent=27 // pred_region
          %s203 = sand.u32 %s30, 1
          %s204 = scalar_lea.sflag [#allocation3], %s203
          %s205 = sand.u32 %s30, 1
          %s206 = smul.addr %s205, 256
          %s207 = scalar_lea.vmem [#allocation2], %s206
          %s208 = smul.u32 16, %s20
          %210 = vsyncadd %s204, 0
          %s211 = smul.addr %s208, 2
          %s212 = smul.addr %s211, 8
          %s213 = scalar_lea.hbm %s0, %s212
          %s214 = sshll.u32 %s213, 4
          %s215 = int_to_ptr.hbm [resolvable:$true] %s214
          %s216 = sshll.u32 %s207, 4
          %s217 = int_to_ptr.vmem [resolvable:$true] %s216
          %222 = dma.hbm_to_vmem [thread:$0]  %s215, 4096, %s217, %s204, 256, 256, 16
        $region32: #{tpu_custom_call.1} parent=27 // pred_fallthru
          _
        // Predicated region
        $region33: #{tpu_custom_call.1} parent=27 // pred_check
          %p223 = pneg %p66
        $region34: #{tpu_custom_call.1} parent=27 // pred_check_branch
          %225 = sbr.rel (%p223) target = $region36
        $region35: #{tpu_custom_call.1} parent=27 // pred_region
          %s226 = sand.u32 %s20, 1
          %s227 = scalar_lea.sflag [#allocation6], %s226
          %s228 = sand.u32 %s56, 1
          %s229 = smul.addr %s228, 128
          %s230 = scalar_lea.vmem [#allocation5], %s229
          %s231 = smul.u32 16, %s20
          %233 = vsyncadd %s227, 0
          %s234 = smul.addr %s231, 8
          %s235 = scalar_lea.hbm %s1, %s234
          %s236 = sshll.u32 %s235, 4
          %s237 = int_to_ptr.hbm [resolvable:$true] %s236
          %s238 = sshll.u32 %s230, 4
          %s239 = int_to_ptr.vmem [resolvable:$true] %s238
          %244 = dma.hbm_to_vmem [thread:$0]  %s237, 2048, %s239, %s227, 128, 128, 8
        $region36: #{tpu_custom_call.1} parent=27 // pred_fallthru
          _
      $region28: #{tpu_custom_call.1} parent=5 // pred_fallthru
        _
      %p245 = scmp.le.s32.totalorder 1, %s20
      %p246 = scmp.lt.s32.totalorder %s20, 5
      %p247 = pnand %p245, %p246
      %p248 = pneg %p247
      // Predicated region
      $region37: #{tpu_custom_call.1} parent=5 // pred_check
        _
      $region38: #{tpu_custom_call.1} parent=5 // pred_check_branch
        %250 = sbr.rel (%p247) target = $region40
      $region39: #{tpu_custom_call.1} parent=5 // pred_region
        %s251 = ssub.s32 %s20, 1
        %s252 = sand.u32 %s33, 1
        %s253 = scalar_lea.sflag [#allocation3], %s252
        %s254 = sand.u32 %s33, 1
        %s255 = smul.addr %s254, 256
        %s256 = scalar_lea.vmem [#allocation2], %s255
        // Predicated region
        $region41: #{tpu_custom_call.1} parent=39 // pred_check
          %p257 = pneg %p46
        $region42: #{tpu_custom_call.1} parent=39 // pred_check_branch
          %259 = sbr.rel (%p257) target = $region44
        $region43: #{tpu_custom_call.1} parent=39 // pred_region
          %261 = dma.done %s253, 4096
        $region44: #{tpu_custom_call.1} parent=39 // pred_fallthru
          _
        %s262 = sand.u32 %s25, 1
        %s263 = scalar_lea.sflag [#allocation6], %s262
        %s264 = sand.u32 %s59, 1
        %s265 = smul.addr %s264, 128
        %s266 = scalar_lea.vmem [#allocation5], %s265
        // Predicated region
        $region45: #{tpu_custom_call.1} parent=39 // pred_check
          %p267 = pneg %p72
        $region46: #{tpu_custom_call.1} parent=39 // pred_check_branch
          %269 = sbr.rel (%p267) target = $region48
        $region47: #{tpu_custom_call.1} parent=39 // pred_region
          %271 = dma.done %s263, 2048
        $region48: #{tpu_custom_call.1} parent=39 // pred_fallthru
          _
        // Predicated region
        $region49: #{tpu_custom_call.1} parent=39 // pred_check
          %p272 = pneg %p93
        $region50: #{tpu_custom_call.1} parent=39 // pred_check_branch
          %274 = sbr.rel (%p272) target = $region52
        $region51: #{tpu_custom_call.1} parent=39 // pred_region
          %276 = dma.done [#allocation6], 4096
        $region52: #{tpu_custom_call.1} parent=39 // pred_fallthru
          _
        %s277 = sand.u32 %s33, 1
        %s278 = scalar_lea.sflag [#allocation3], %s277
        %s279 = sand.u32 %s33, 1
        %s280 = smul.addr %s279, 256
        %s281 = scalar_lea.vmem [#allocation2], %s280
        %p282 = pneg %p46
        %p283 = pneg %p43
        %s284 = sand.u32 %s25, 1
        %s285 = scalar_lea.sflag [#allocation6], %s284
        %s286 = sand.u32 %s59, 1
        %s287 = smul.addr %s286, 128
        %s288 = scalar_lea.vmem [#allocation5], %s287
        %p289 = pneg %p72
        %p290 = pneg %p69
        %p291 = pneg %p93
        %p292 = pneg %p90
        %p293 = pneg %p114
        %p294 = pneg %p111
        %p295 = pneg %p135
        %p296 = pneg %p132
        %p297 = pneg %p161
        %p298 = pneg %p158
        %s299 = sand.u32 %s148, 1
        %s300 = scalar_lea.sflag [#allocation4], %s299
        %s301 = sand.u32 %s148, 1
        %s302 = scalar_lea.vmem [#allocation8], %s301
        %s303 = smul.u32 16, %s25
        %s304 = smul.u32 16, %s25
        %v305 = vld [vmem:[%s256] sm:$0xff]
        %v306 = vld [vmem:[%s256 + $0x8] sm:$0xff]
        %v307 = vld [vmem:[%s256 + $0x10] sm:$0xff]
        %v308 = vld [vmem:[%s256 + $0x18] sm:$0xff]
        %v309 = vld [vmem:[%s256 + $0x20] sm:$0xff]
        %v310 = vld [vmem:[%s256 + $0x28] sm:$0xff]
        %v311 = vld [vmem:[%s256 + $0x30] sm:$0xff]
        %v312 = vld [vmem:[%s256 + $0x38] sm:$0xff]
        %v313 = vld [vmem:[%s256 + $0x40] sm:$0xff]
        %v314 = vld [vmem:[%s256 + $0x48] sm:$0xff]
        %v315 = vld [vmem:[%s256 + $0x50] sm:$0xff]
        %v316 = vld [vmem:[%s256 + $0x58] sm:$0xff]
        %v317 = vld [vmem:[%s256 + $0x60] sm:$0xff]
        %v318 = vld [vmem:[%s256 + $0x68] sm:$0xff]
        %v319 = vld [vmem:[%s256 + $0x70] sm:$0xff]
        %v320 = vld [vmem:[%s256 + $0x78] sm:$0xff]
        %v321 = vld [vmem:[%s256 + $0x80] sm:$0xff]
        %v322 = vld [vmem:[%s256 + $0x88] sm:$0xff]
        %v323 = vld [vmem:[%s256 + $0x90] sm:$0xff]
        %v324 = vld [vmem:[%s256 + $0x98] sm:$0xff]
        %v325 = vld [vmem:[%s256 + $0xa0] sm:$0xff]
        %v326 = vld [vmem:[%s256 + $0xa8] sm:$0xff]
        %v327 = vld [vmem:[%s256 + $0xb0] sm:$0xff]
        %v328 = vld [vmem:[%s256 + $0xb8] sm:$0xff]
        %v329 = vld [vmem:[%s256 + $0xc0] sm:$0xff]
        %v330 = vld [vmem:[%s256 + $0xc8] sm:$0xff]
        %v331 = vld [vmem:[%s256 + $0xd0] sm:$0xff]
        %v332 = vld [vmem:[%s256 + $0xd8] sm:$0xff]
        %v333 = vld [vmem:[%s256 + $0xe0] sm:$0xff]
        %v334 = vld [vmem:[%s256 + $0xe8] sm:$0xff]
        %v335 = vld [vmem:[%s256 + $0xf0] sm:$0xff]
        %v336 = vld [vmem:[%s256 + $0xf8] sm:$0xff]
        %v337 = vld [vmem:[%s266] sm:$0xff]
        %v338 = vld [vmem:[%s266 + $0x8] sm:$0xff]
        %v339 = vld [vmem:[%s266 + $0x10] sm:$0xff]
        %v340 = vld [vmem:[%s266 + $0x18] sm:$0xff]
        %v341 = vld [vmem:[%s266 + $0x20] sm:$0xff]
        %v342 = vld [vmem:[%s266 + $0x28] sm:$0xff]
        %v343 = vld [vmem:[%s266 + $0x30] sm:$0xff]
        %v344 = vld [vmem:[%s266 + $0x38] sm:$0xff]
        %v345 = vld [vmem:[%s266 + $0x40] sm:$0xff]
        %v346 = vld [vmem:[%s266 + $0x48] sm:$0xff]
        %v347 = vld [vmem:[%s266 + $0x50] sm:$0xff]
        %v348 = vld [vmem:[%s266 + $0x58] sm:$0xff]
        %v349 = vld [vmem:[%s266 + $0x60] sm:$0xff]
        %v350 = vld [vmem:[%s266 + $0x68] sm:$0xff]
        %v351 = vld [vmem:[%s266 + $0x70] sm:$0xff]
        %v352 = vld [vmem:[%s266 + $0x78] sm:$0xff]
        %v353 = vld [vmem:[#allocation7] sm:$0xff]
        %v354 = vld [vmem:[#allocation7 + $0x8] sm:$0xff]
        %v355 = vld [vmem:[#allocation7 + $0x10] sm:$0xff]
        %v356 = vld [vmem:[#allocation7 + $0x18] sm:$0xff]
        %v357 = vld [vmem:[#allocation7 + $0x20] sm:$0xff]
        %v358 = vld [vmem:[#allocation7 + $0x28] sm:$0xff]
        %v359 = vld [vmem:[#allocation7 + $0x30] sm:$0xff]
        %v360 = vld [vmem:[#allocation7 + $0x38] sm:$0xff]
        %v361 = vld [vmem:[#allocation7 + $0x40] sm:$0xff]
        %v362 = vld [vmem:[#allocation7 + $0x48] sm:$0xff]
        %v363 = vld [vmem:[#allocation7 + $0x50] sm:$0xff]
        %v364 = vld [vmem:[#allocation7 + $0x58] sm:$0xff]
        %v365 = vld [vmem:[#allocation7 + $0x60] sm:$0xff]
        %v366 = vld [vmem:[#allocation7 + $0x68] sm:$0xff]
        %v367 = vld [vmem:[#allocation7 + $0x70] sm:$0xff]
        %v368 = vld [vmem:[#allocation7 + $0x78] sm:$0xff]
        %v369 = vld [vmem:[#allocation7 + $0x80] sm:$0xff]
        %v370 = vld [vmem:[#allocation7 + $0x88] sm:$0xff]
        %v371 = vld [vmem:[#allocation7 + $0x90] sm:$0xff]
        %v372 = vld [vmem:[#allocation7 + $0x98] sm:$0xff]
        %v373 = vld [vmem:[#allocation7 + $0xa0] sm:$0xff]
        %v374 = vld [vmem:[#allocation7 + $0xa8] sm:$0xff]
        %v375 = vld [vmem:[#allocation7 + $0xb0] sm:$0xff]
        %v376 = vld [vmem:[#allocation7 + $0xb8] sm:$0xff]
        %v377 = vld [vmem:[#allocation7 + $0xc0] sm:$0xff]
        %v378 = vld [vmem:[#allocation7 + $0xc8] sm:$0xff]
        %v379 = vld [vmem:[#allocation7 + $0xd0] sm:$0xff]
        %v380 = vld [vmem:[#allocation7 + $0xd8] sm:$0xff]
        %v381 = vld [vmem:[#allocation7 + $0xe0] sm:$0xff]
        %v382 = vld [vmem:[#allocation7 + $0xe8] sm:$0xff]
        %v383 = vld [vmem:[#allocation7 + $0xf0] sm:$0xff]
        %v384 = vld [vmem:[#allocation7 + $0xf8] sm:$0xff]
        %v385 = vld [vmem:[%s3] sm:$0x3]
        %v386 = vld [vmem:[%s4] sm:$0x1]
        %v388 = vperm.slane %v386, 0
        %390 = vmatpush.msra.mxu0 %v368
        %391 = vmatpush.msra.mxu0 %v367
        %392 = vmatpush.msra.mxu0 %v366
        %393 = vmatpush.msra.mxu0 %v365
        %394 = vmatpush.msra.mxu0 %v364
        %395 = vmatpush.msra.mxu0 %v363
        %396 = vmatpush.msra.mxu0 %v362
        %397 = vmatpush.msra.mxu0 %v361
        %398 = vmatpush.msra.mxu0 %v360
        %399 = vmatpush.msra.mxu0 %v359
        %400 = vmatpush.msra.mxu0 %v358
        %401 = vmatpush.msra.mxu0 %v357
        %402 = vmatpush.msra.mxu0 %v356
        %403 = vmatpush.msra.mxu0 %v355
        %404 = vmatpush.msra.mxu0 %v354
        %405 = vmatpush.msra.mxu0 %v353
        %406 = vmatmul.f32.gmra.mxu0 %v305
        %v407 = vpop.f32.mrf.mxu0
        %v408 = vadd.f32 %v388, %v407
        %409 = vmatmul.f32.gmra.mxu0 %v307
        %v410 = vpop.f32.mrf.mxu0
        %v411 = vadd.f32 %v388, %v410
        %412 = vmatmul.f32.gmra.mxu0 %v309
        %v413 = vpop.f32.mrf.mxu0
        %v414 = vadd.f32 %v388, %v413
        %415 = vmatmul.f32.gmra.mxu0 %v311
        %v416 = vpop.f32.mrf.mxu0
        %v417 = vadd.f32 %v388, %v416
        %418 = vmatmul.f32.gmra.mxu0 %v313
        %v419 = vpop.f32.mrf.mxu0
        %v420 = vadd.f32 %v388, %v419
        %421 = vmatmul.f32.gmra.mxu0 %v315
        %v422 = vpop.f32.mrf.mxu0
        %v423 = vadd.f32 %v388, %v422
        %424 = vmatmul.f32.gmra.mxu0 %v317
        %v425 = vpop.f32.mrf.mxu0
        %v426 = vadd.f32 %v388, %v425
        %427 = vmatmul.f32.gmra.mxu0 %v319
        %v428 = vpop.f32.mrf.mxu0
        %v429 = vadd.f32 %v388, %v428
        %430 = vmatmul.f32.gmra.mxu0 %v321
        %v431 = vpop.f32.mrf.mxu0
        %v432 = vadd.f32 %v388, %v431
        %433 = vmatmul.f32.gmra.mxu0 %v323
        %v434 = vpop.f32.mrf.mxu0
        %v435 = vadd.f32 %v388, %v434
        %436 = vmatmul.f32.gmra.mxu0 %v325
        %v437 = vpop.f32.mrf.mxu0
        %v438 = vadd.f32 %v388, %v437
        %439 = vmatmul.f32.gmra.mxu0 %v327
        %v440 = vpop.f32.mrf.mxu0
        %v441 = vadd.f32 %v388, %v440
        %442 = vmatmul.f32.gmra.mxu0 %v329
        %v443 = vpop.f32.mrf.mxu0
        %v444 = vadd.f32 %v388, %v443
        %445 = vmatmul.f32.gmra.mxu0 %v331
        %v446 = vpop.f32.mrf.mxu0
        %v447 = vadd.f32 %v388, %v446
        %448 = vmatmul.f32.gmra.mxu0 %v333
        %v449 = vpop.f32.mrf.mxu0
        %v450 = vadd.f32 %v388, %v449
        %451 = vmatmul.f32.gmra.mxu0 %v335
        %v452 = vpop.f32.mrf.mxu0
        %v453 = vadd.f32 %v388, %v452
        %454 = vdwg.mxu0
        %455 = vmatpush.msra.mxu0 %v384
        %456 = vmatpush.msra.mxu0 %v383
        %457 = vmatpush.msra.mxu0 %v382
        %458 = vmatpush.msra.mxu0 %v381
        %459 = vmatpush.msra.mxu0 %v380
        %460 = vmatpush.msra.mxu0 %v379
        %461 = vmatpush.msra.mxu0 %v378
        %462 = vmatpush.msra.mxu0 %v377
        %463 = vmatpush.msra.mxu0 %v376
        %464 = vmatpush.msra.mxu0 %v375
        %465 = vmatpush.msra.mxu0 %v374
        %466 = vmatpush.msra.mxu0 %v373
        %467 = vmatpush.msra.mxu0 %v372
        %468 = vmatpush.msra.mxu0 %v371
        %469 = vmatpush.msra.mxu0 %v370
        %470 = vmatpush.msra.mxu0 %v369
        %471 = vmatmul.f32.gmra.mxu0 %v306
        %v472 = vpop.f32.mrf.mxu0
        %v473 = vadd.f32 %v408, %v472
        %474 = vmatmul.f32.gmra.mxu0 %v308
        %v475 = vpop.f32.mrf.mxu0
        %v476 = vadd.f32 %v411, %v475
        %477 = vmatmul.f32.gmra.mxu0 %v310
        %v478 = vpop.f32.mrf.mxu0
        %v479 = vadd.f32 %v414, %v478
        %480 = vmatmul.f32.gmra.mxu0 %v312
        %v481 = vpop.f32.mrf.mxu0
        %v482 = vadd.f32 %v417, %v481
        %483 = vmatmul.f32.gmra.mxu0 %v314
        %v484 = vpop.f32.mrf.mxu0
        %v485 = vadd.f32 %v420, %v484
        %486 = vmatmul.f32.gmra.mxu0 %v316
        %v487 = vpop.f32.mrf.mxu0
        %v488 = vadd.f32 %v423, %v487
        %489 = vmatmul.f32.gmra.mxu0 %v318
        %v490 = vpop.f32.mrf.mxu0
        %v491 = vadd.f32 %v426, %v490
        %492 = vmatmul.f32.gmra.mxu0 %v320
        %v493 = vpop.f32.mrf.mxu0
        %v494 = vadd.f32 %v429, %v493
        %495 = vmatmul.f32.gmra.mxu0 %v322
        %v496 = vpop.f32.mrf.mxu0
        %v497 = vadd.f32 %v432, %v496
        %498 = vmatmul.f32.gmra.mxu0 %v324
        %v499 = vpop.f32.mrf.mxu0
        %v500 = vadd.f32 %v435, %v499
        %501 = vmatmul.f32.gmra.mxu0 %v326
        %v502 = vpop.f32.mrf.mxu0
        %v503 = vadd.f32 %v438, %v502
        %504 = vmatmul.f32.gmra.mxu0 %v328
        %v505 = vpop.f32.mrf.mxu0
        %v506 = vadd.f32 %v441, %v505
        %507 = vmatmul.f32.gmra.mxu0 %v330
        %v508 = vpop.f32.mrf.mxu0
        %v509 = vadd.f32 %v444, %v508
        %510 = vmatmul.f32.gmra.mxu0 %v332
        %v511 = vpop.f32.mrf.mxu0
        %v512 = vadd.f32 %v447, %v511
        %513 = vmatmul.f32.gmra.mxu0 %v334
        %v514 = vpop.f32.mrf.mxu0
        %v515 = vadd.f32 %v450, %v514
        %516 = vmatmul.f32.gmra.mxu0 %v336
        %v517 = vpop.f32.mrf.mxu0
        %v518 = vadd.f32 %v453, %v517
        %519 = vdwg.mxu0
        %v520 = vmul.f32 %v337, %v473
        %v521 = vmul.f32 %v338, %v476
        %v522 = vmul.f32 %v339, %v479
        %v523 = vmul.f32 %v340, %v482
        %v524 = vmul.f32 %v341, %v485
        %v525 = vmul.f32 %v342, %v488
        %v526 = vmul.f32 %v343, %v491
        %v527 = vmul.f32 %v344, %v494
        %v528 = vmul.f32 %v345, %v497
        %v529 = vmul.f32 %v346, %v500
        %v530 = vmul.f32 %v347, %v503
        %v531 = vmul.f32 %v348, %v506
        %v532 = vmul.f32 %v349, %v509
        %v533 = vmul.f32 %v350, %v512
        %v534 = vmul.f32 %v351, %v515
        %v535 = vmul.f32 %v352, %v518
        %v536 = vmul.f32 %v305, 0.5
        %v537 = vmul.f32 %v306, 0.5
        %v538 = vmul.f32 %v307, 0.5
        %v539 = vmul.f32 %v308, 0.5
        %v540 = vmul.f32 %v309, 0.5
        %v541 = vmul.f32 %v310, 0.5
        %v542 = vmul.f32 %v311, 0.5
        %v543 = vmul.f32 %v312, 0.5
        %v544 = vmul.f32 %v313, 0.5
        %v545 = vmul.f32 %v314, 0.5
        %v546 = vmul.f32 %v315, 0.5
        %v547 = vmul.f32 %v316, 0.5
        %v548 = vmul.f32 %v317, 0.5
        %v549 = vmul.f32 %v318, 0.5
        %v550 = vmul.f32 %v319, 0.5
        %v551 = vmul.f32 %v320, 0.5
        %v552 = vmul.f32 %v321, 0.5
        %v553 = vmul.f32 %v322, 0.5
        %v554 = vmul.f32 %v323, 0.5
        %v555 = vmul.f32 %v324, 0.5
        %v556 = vmul.f32 %v325, 0.5
        %v557 = vmul.f32 %v326, 0.5
        %v558 = vmul.f32 %v327, 0.5
        %v559 = vmul.f32 %v328, 0.5
        %v560 = vmul.f32 %v329, 0.5
        %v561 = vmul.f32 %v330, 0.5
        %v562 = vmul.f32 %v331, 0.5
        %v563 = vmul.f32 %v332, 0.5
        %v564 = vmul.f32 %v333, 0.5
        %v565 = vmul.f32 %v334, 0.5
        %v566 = vmul.f32 %v335, 0.5
        %v567 = vmul.f32 %v336, 0.5
        %v569 = vperm.slane %v385, 0
        %v570 = vperm.slane %v385, 1
        %v573 = vsub.f32 %v569, %v536
        %v574 = vsub.f32 %v570, %v537
        %v575 = vsub.f32 %v569, %v538
        %v576 = vsub.f32 %v570, %v539
        %v577 = vsub.f32 %v569, %v540
        %v578 = vsub.f32 %v570, %v541
        %v579 = vsub.f32 %v569, %v542
        %v580 = vsub.f32 %v570, %v543
        %v581 = vsub.f32 %v569, %v544
        %v582 = vsub.f32 %v570, %v545
        %v583 = vsub.f32 %v569, %v546
        %v584 = vsub.f32 %v570, %v547
        %v585 = vsub.f32 %v569, %v548
        %v586 = vsub.f32 %v570, %v549
        %v587 = vsub.f32 %v569, %v550
        %v588 = vsub.f32 %v570, %v551
        %v589 = vsub.f32 %v569, %v552
        %v590 = vsub.f32 %v570, %v553
        %v591 = vsub.f32 %v569, %v554
        %v592 = vsub.f32 %v570, %v555
        %v593 = vsub.f32 %v569, %v556
        %v594 = vsub.f32 %v570, %v557
        %v595 = vsub.f32 %v569, %v558
        %v596 = vsub.f32 %v570, %v559
        %v597 = vsub.f32 %v569, %v560
        %v598 = vsub.f32 %v570, %v561
        %v599 = vsub.f32 %v569, %v562
        %v600 = vsub.f32 %v570, %v563
        %v601 = vsub.f32 %v569, %v564
        %v602 = vsub.f32 %v570, %v565
        %v603 = vsub.f32 %v569, %v566
        %v604 = vsub.f32 %v570, %v567
        %v605 = vmul.f32 %v305, %v573
        %v606 = vmul.f32 %v306, %v574
        %v607 = vmul.f32 %v307, %v575
        %v608 = vmul.f32 %v308, %v576
        %v609 = vmul.f32 %v309, %v577
        %v610 = vmul.f32 %v310, %v578
        %v611 = vmul.f32 %v311, %v579
        %v612 = vmul.f32 %v312, %v580
        %v613 = vmul.f32 %v313, %v581
        %v614 = vmul.f32 %v314, %v582
        %v615 = vmul.f32 %v315, %v583
        %v616 = vmul.f32 %v316, %v584
        %v617 = vmul.f32 %v317, %v585
        %v618 = vmul.f32 %v318, %v586
        %v619 = vmul.f32 %v319, %v587
        %v620 = vmul.f32 %v320, %v588
        %v621 = vmul.f32 %v321, %v589
        %v622 = vmul.f32 %v322, %v590
        %v623 = vmul.f32 %v323, %v591
        %v624 = vmul.f32 %v324, %v592
        %v625 = vmul.f32 %v325, %v593
        %v626 = vmul.f32 %v326, %v594
        %v627 = vmul.f32 %v327, %v595
        %v628 = vmul.f32 %v328, %v596
        %v629 = vmul.f32 %v329, %v597
        %v630 = vmul.f32 %v330, %v598
        %v631 = vmul.f32 %v331, %v599
        %v632 = vmul.f32 %v332, %v600
        %v633 = vmul.f32 %v333, %v601
        %v634 = vmul.f32 %v334, %v602
        %v635 = vmul.f32 %v335, %v603
        %v636 = vmul.f32 %v336, %v604
        %637 = vmatpush.xpose.msra.mxu0 %v635
        %638 = vmatpush.xpose.msra.mxu0 %v633
        %639 = vmatpush.xpose.msra.mxu0 %v631
        %640 = vmatpush.xpose.msra.mxu0 %v629
        %641 = vmatpush.xpose.msra.mxu0 %v627
        %642 = vmatpush.xpose.msra.mxu0 %v625
        %643 = vmatpush.xpose.msra.mxu0 %v623
        %644 = vmatpush.xpose.msra.mxu0 %v621
        %645 = vmatpush.xpose.msra.mxu0 %v619
        %646 = vmatpush.xpose.msra.mxu0 %v617
        %647 = vmatpush.xpose.msra.mxu0 %v615
        %648 = vmatpush.xpose.msra.mxu0 %v613
        %649 = vmatpush.xpose.msra.mxu0 %v611
        %650 = vmatpush.xpose.msra.mxu0 %v609
        %651 = vmatpush.xpose.msra.mxu0 %v607
        %652 = vmatpush.xpose.msra.mxu0 %v605
        %653 = vmatmul.f32.gmra.mxu0 1.0
        %v654 = vpop.f32.mrf.mxu0
        %v655 = vadd.f32 0.0, %v654
        %656 = vdwg.mxu0
        %657 = vmatpush.xpose.msra.mxu0 %v636
        %658 = vmatpush.xpose.msra.mxu0 %v634
        %659 = vmatpush.xpose.msra.mxu0 %v632
        %660 = vmatpush.xpose.msra.mxu0 %v630
        %661 = vmatpush.xpose.msra.mxu0 %v628
        %662 = vmatpush.xpose.msra.mxu0 %v626
        %663 = vmatpush.xpose.msra.mxu0 %v624
        %664 = vmatpush.xpose.msra.mxu0 %v622
        %665 = vmatpush.xpose.msra.mxu0 %v620
        %666 = vmatpush.xpose.msra.mxu0 %v618
        %667 = vmatpush.xpose.msra.mxu0 %v616
        %668 = vmatpush.xpose.msra.mxu0 %v614
        %669 = vmatpush.xpose.msra.mxu0 %v612
        %670 = vmatpush.xpose.msra.mxu0 %v610
        %671 = vmatpush.xpose.msra.mxu0 %v608
        %672 = vmatpush.xpose.msra.mxu0 %v606
        %673 = vmatmul.f32.gmra.mxu0 1.0
        %v674 = vpop.f32.mrf.mxu0
        %v675 = vadd.f32 %v655, %v674
        %676 = vdwg.mxu0
        %677 = vmatpush.xpose.msra.mxu0 %v535
        %678 = vmatpush.xpose.msra.mxu0 %v534
        %679 = vmatpush.xpose.msra.mxu0 %v533
        %680 = vmatpush.xpose.msra.mxu0 %v532
        %681 = vmatpush.xpose.msra.mxu0 %v531
        %682 = vmatpush.xpose.msra.mxu0 %v530
        %683 = vmatpush.xpose.msra.mxu0 %v529
        %684 = vmatpush.xpose.msra.mxu0 %v528
        %685 = vmatpush.xpose.msra.mxu0 %v527
        %686 = vmatpush.xpose.msra.mxu0 %v526
        %687 = vmatpush.xpose.msra.mxu0 %v525
        %688 = vmatpush.xpose.msra.mxu0 %v524
        %689 = vmatpush.xpose.msra.mxu0 %v523
        %690 = vmatpush.xpose.msra.mxu0 %v522
        %691 = vmatpush.xpose.msra.mxu0 %v521
        %692 = vmatpush.xpose.msra.mxu0 %v520
        %693 = vmatmul.f32.gmra.mxu0 1.0
        %v694 = vpop.f32.mrf.mxu0
        %v695 = vadd.f32 %v675, %v694
        %696 = vdwg.mxu0
        %697 = vst [vmem:[%s302] sm:$0x1] %v695
        %s698 = sand.u32 %s148, 1
        %s699 = scalar_lea.sflag [#allocation4], %s698
        %s700 = sand.u32 %s148, 1
        %s701 = scalar_lea.vmem [#allocation8], %s700
        // Predicated region
        $region53: #{tpu_custom_call.1} parent=39 // pred_check
          %p702 = pneg %p158
        $region54: #{tpu_custom_call.1} parent=39 // pred_check_branch
          %704 = sbr.rel (%p702) target = $region56
        $region55: #{tpu_custom_call.1} parent=39 // pred_region
          %706 = vsyncadd %s699, 0
          %s707 = scalar_lea.hbm %s5, %s25
          %s709 = sshll.u32 %s701, 4
          %s710 = int_to_ptr.vmem [resolvable:$true] %s709
          %s711 = sshll.u32 %s707, 4
          %s712 = int_to_ptr.hbm [resolvable:$true] %s711
          %714 = dma.vmem_to_hbm [thread:$0]  %s710, 16, %s712, %s699
        $region56: #{tpu_custom_call.1} parent=39 // pred_fallthru
          _
      $region40: #{tpu_custom_call.1} parent=5 // pred_fallthru
        _
      %p715 = scmp.le.s32.totalorder 2, %s20
      // Predicated region
      $region57: #{tpu_custom_call.1} parent=5 // pred_check
        %p716 = pneg %p715
      $region58: #{tpu_custom_call.1} parent=5 // pred_check_branch
        %718 = sbr.rel (%p716) target = $region60
      $region59: #{tpu_custom_call.1} parent=5 // pred_region
        %s719 = ssub.s32 %s20, 2
        // Predicated region
        $region61: #{tpu_custom_call.1} parent=59 // pred_check
          %p720 = pneg %p164
        $region62: #{tpu_custom_call.1} parent=59 // pred_check_branch
          %722 = sbr.rel (%p720) target = $region64
        $region63: #{tpu_custom_call.1} parent=59 // pred_region
          %s723 = sand.u32 %s149, 1
          %s724 = scalar_lea.sflag [#allocation4], %s723
          %s725 = sand.u32 %s149, 1
          %s726 = scalar_lea.vmem [#allocation8], %s725
          %728 = dma.done %s724, 16
        $region64: #{tpu_custom_call.1} parent=59 // pred_fallthru
          _
      $region60: #{tpu_custom_call.1} parent=5 // pred_fallthru
        _
    $region6: #{tpu_custom_call.1} parent=1 // loop_footer
      %s24 = sadd.s32 1, %s20
    $region7: #{tpu_custom_call.1} parent=1 // loop_footer_branch
      %19 = sbr.rel target = $region3
    $region8: #{tpu_custom_call.1} parent=1 // loop_exit
      _
    %729 = vsyncpa [#allocation3], 1
    %s730 = scalar_lea.sflag [#allocation3], 1
    %731 = vsyncpa %s730, 1
    %732 = vsyncpa [#allocation6], 1
    %s733 = scalar_lea.sflag [#allocation6], 1
    %734 = vsyncpa %s733, 1
    %735 = vsyncpa [#allocation4], 1
    %s736 = scalar_lea.sflag [#allocation4], 1
    %737 = vsyncpa %s736, 1

</llo_original>
